<compile_context>
chip_gen: v7x
topology: tpu7x:2x2x1
jax: 0.10.0
libtpu: 0.0.40
codegen_flags: <defaults>
</compile_context>

<pallas_src>
import jax
import jax.numpy as jnp
from jax import lax
from jax.experimental import pallas as pl
from jax.experimental.pallas import tpu as pltpu


def mlp_kernel(x_ref,
               w1_ref, b1_ref,
               w2_ref, b2_ref,
               w3_ref, b3_ref,
               w4_ref, b4_ref,
               o_ref):
    """One batch tile through all four layers, transposed (feat, tile_m) layout."""
    # x tile: (tile_m, in_dim). Contract over in_dim of both operands
    # (the "A @ B.T" MXU pattern, same dimension numbers as splash attention).
    x_bf = x_ref[...].astype(jnp.bfloat16)

    h1 = lax.dot_general(w1_ref[...], x_bf,
                         dimension_numbers=(((1,), (1,)), ((), ())),
                         preferred_element_type=jnp.float32)       # (128, tile_m)
    h1 = jnp.maximum(h1 + b1_ref[...], 0.0)

    h2 = jnp.dot(w2_ref[...], h1.astype(jnp.bfloat16),
                 preferred_element_type=jnp.float32)               # (256, tile_m)
    h2 = jnp.maximum(h2 + b2_ref[...], 0.0)

    h3 = jnp.dot(w3_ref[...], h2.astype(jnp.bfloat16),
                 preferred_element_type=jnp.float32)               # (128, tile_m)
    h3 = jnp.maximum(h3 + b3_ref[...], 0.0)

    y = jnp.dot(w4_ref[...], h3.astype(jnp.bfloat16),
                preferred_element_type=jnp.float32)                # (out_dim, tile_m)
    o_ref[...] = (y + b4_ref[...]).astype(o_ref.dtype)


def _round_up(x, m):
    return ((x + m - 1) // m) * m


def _pick_tile_m(M, max_tile_m):
    """tile_m is the lane dim of the transposed output block -> multiple of 128
    (or the full batch if the batch is tiny). Prefer >= 2 grid steps so both
    v7x TensorCores get work; cap at max_tile_m."""
    if M <= 128:
        return int(M)
    half = _round_up(pl.cdiv(M, 2), 128)
    return int(max(128, min(max_tile_m, half)))


def mlp_forward(x, params, *, max_tile_m=512):
    """x: (batch, in_dim) float32 -> (batch, out_dim) float32."""
    M, in_dim = x.shape
    out_dim = params["w4"].shape[0]

    tile_m = _pick_tile_m(M, max_tile_m)
    grid = (pl.cdiv(M, tile_m),)   # no pad; last partial tile is clipped by Pallas

    def full_spec(arr):
        # Constant block index -> fetched once, stays resident in VMEM.
        return pl.BlockSpec(arr.shape, lambda i: (0, 0))

    in_specs = [
        pl.BlockSpec((tile_m, in_dim), lambda i: (i, 0)),          # x batch tile
        full_spec(params["w1"]), full_spec(params["b1"]),
        full_spec(params["w2"]), full_spec(params["b2"]),
        full_spec(params["w3"]), full_spec(params["b3"]),
        full_spec(params["w4"]), full_spec(params["b4"]),
    ]
    # Output produced transposed: (out_dim, M), batch on the lane axis.
    out_specs = pl.BlockSpec((out_dim, tile_m), lambda i: (0, i))

    out_t = pl.pallas_call(
        mlp_kernel,
        out_shape=jax.ShapeDtypeStruct((out_dim, M), jnp.float32),
        grid_spec=pltpu.PrefetchScalarGridSpec(
            num_scalar_prefetch=0,
            grid=grid,
            in_specs=in_specs,
            out_specs=out_specs,
        ),
        compiler_params=pltpu.CompilerParams(
            dimension_semantics=("parallel",)),
    )(x,
      params["w1"], params["b1"],
      params["w2"], params["b2"],
      params["w3"], params["b3"],
      params["w4"], params["b4"])

    return out_t.T   # back to (batch, out_dim); tiny array, cheap transpose


def init_params(key, in_dim, out_dim):
    """Deterministic init matching torch.nn.Linear's default U(-1/sqrt(fan_in), ...).

    Weights kept in torch-native (out_features, in_features) layout, stored bf16
    (MXU operands). Biases stored as (out_features, 1) f32 columns so they
    broadcast over the lane (batch) axis inside the kernel."""
    dims = [(in_dim, 128), (128, 256), (256, 128), (128, out_dim)]
    params = {}
    for idx, (fan_in, fan_out) in enumerate(dims, start=1):
        key, kw, kb = jax.random.split(key, 3)
        bound = 1.0 / (fan_in ** 0.5)
        w = jax.random.uniform(kw, (fan_out, fan_in), jnp.float32, -bound, bound)
        b = jax.random.uniform(kb, (fan_out, 1), jnp.float32, -bound, bound)
        params[f"w{idx}"] = w.astype(jnp.bfloat16)
        params[f"b{idx}"] = b
    return params


def mlp_reference(x, params):
    """Pure-JAX reference that mirrors the kernel's numerics
    (bf16 matmul operands, f32 accumulation, f32 bias/ReLU)."""
    def linear(h, w, b):
        y = jnp.dot(h.astype(jnp.bfloat16), w.T,
                    preferred_element_type=jnp.float32)
        return y + b[:, 0]

    h = jnp.maximum(linear(x, params["w1"], params["b1"]), 0.0)
    h = jnp.maximum(linear(h, params["w2"], params["b2"]), 0.0)
    h = jnp.maximum(linear(h, params["w3"], params["b3"]), 0.0)
    return linear(h, params["w4"], params["b4"])


if __name__ == "__main__":
    in_dim, out_dim = 8, 4
    batch = 200  # not a multiple of the tile -> exercises the clipped last tile

    key = jax.random.PRNGKey(0)
    key, kx = jax.random.split(key)
    x = jax.random.normal(kx, (batch, in_dim), jnp.float32)
    params = init_params(key, in_dim, out_dim)

    y = mlp_forward(x, params)
    jax.block_until_ready(y)

    y_ref = mlp_reference(x, params)
    assert y.shape == (batch, out_dim)
    assert jnp.allclose(y, y_ref, atol=1e-3, rtol=1e-2), \
        f"max abs err {float(jnp.max(jnp.abs(y - y_ref)))}"

    print("KERNEL_OK")
</pallas_src>

<mosaic_0001>
module attributes {stable_mosaic.version = 11 : i64} {
  func.func @mlp_kernel(%arg0: i32, %arg1: memref<128x8xf32, #tpu.memory_space<vmem>>, %arg2: memref<128x8xbf16, #tpu.memory_space<vmem>>, %arg3: memref<128x1xf32, #tpu.memory_space<vmem>>, %arg4: memref<256x128xbf16, #tpu.memory_space<vmem>>, %arg5: memref<256x1xf32, #tpu.memory_space<vmem>>, %arg6: memref<128x256xbf16, #tpu.memory_space<vmem>>, %arg7: memref<128x1xf32, #tpu.memory_space<vmem>>, %arg8: memref<4x128xbf16, #tpu.memory_space<vmem>>, %arg9: memref<4x1xf32, #tpu.memory_space<vmem>>, %arg10: memref<4x128xf32, #tpu.memory_space<vmem>>) attributes {dimension_semantics = [#tpu.dimension_semantics<parallel>], iteration_bounds = array<i64: 2>, scalar_prefetch = 0 : i64, scratch_operands = 0 : i64, tpu.core_type = #tpu.core_type<tc>, window_params = [{transform_indices = @transform_0, window_bounds = array<i64: 128, 8>}, {pipeline_mode = #tpu.pipeline_mode<synchronous>, transform_indices = @transform_1, window_bounds = array<i64: 128, 8>}, {pipeline_mode = #tpu.pipeline_mode<synchronous>, transform_indices = @transform_2, window_bounds = array<i64: 128, 1>}, {pipeline_mode = #tpu.pipeline_mode<synchronous>, transform_indices = @transform_3, window_bounds = array<i64: 256, 128>}, {pipeline_mode = #tpu.pipeline_mode<synchronous>, transform_indices = @transform_4, window_bounds = array<i64: 256, 1>}, {pipeline_mode = #tpu.pipeline_mode<synchronous>, transform_indices = @transform_5, window_bounds = array<i64: 128, 256>}, {pipeline_mode = #tpu.pipeline_mode<synchronous>, transform_indices = @transform_6, window_bounds = array<i64: 128, 1>}, {pipeline_mode = #tpu.pipeline_mode<synchronous>, transform_indices = @transform_7, window_bounds = array<i64: 4, 128>}, {pipeline_mode = #tpu.pipeline_mode<synchronous>, transform_indices = @transform_8, window_bounds = array<i64: 4, 1>}, {transform_indices = @transform_9, window_bounds = array<i64: 4, 128>}]} {
    %c0 = arith.constant 0 : index
    %c0_0 = arith.constant 0 : index
    %0 = vector.load %arg1[%c0, %c0_0] : memref<128x8xf32, #tpu.memory_space<vmem>>, vector<128x8xf32>
    %1 = arith.truncf %0 : vector<128x8xf32> to vector<128x8xbf16>
    %c0_1 = arith.constant 0 : index
    %c0_2 = arith.constant 0 : index
    %2 = vector.load %arg2[%c0_1, %c0_2] : memref<128x8xbf16, #tpu.memory_space<vmem>>, vector<128x8xbf16>
    %cst = arith.constant dense<0.000000e+00> : vector<128x128xf32>
    %3 = tpu.matmul %2, %1, %cst {dimension_numbers = #tpu.dot_dimension_numbers<[1], [1], [0], [0], [0, 0, 1, 0], [], []>} : vector<128x8xbf16>, vector<128x8xbf16>, vector<128x128xf32> -> vector<128x128xf32>
    %c0_3 = arith.constant 0 : index
    %c0_4 = arith.constant 0 : index
    %4 = vector.load %arg3[%c0_3, %c0_4] : memref<128x1xf32, #tpu.memory_space<vmem>>, vector<128x1xf32>
    %5 = vector.broadcast %4 : vector<128x1xf32> to vector<128x128xf32>
    %6 = arith.addf %3, %5 : vector<128x128xf32>
    %cst_5 = arith.constant 0.000000e+00 : f32
    %7 = vector.broadcast %cst_5 : f32 to vector<128x128xf32>
    %8 = arith.maximumf %6, %7 : vector<128x128xf32>
    %c0_6 = arith.constant 0 : index
    %c0_7 = arith.constant 0 : index
    %9 = vector.load %arg4[%c0_6, %c0_7] : memref<256x128xbf16, #tpu.memory_space<vmem>>, vector<256x128xbf16>
    %10 = arith.truncf %8 : vector<128x128xf32> to vector<128x128xbf16>
    %cst_8 = arith.constant dense<0.000000e+00> : vector<256x128xf32>
    %11 = tpu.matmul %9, %10, %cst_8 {dimension_numbers = #tpu.dot_dimension_numbers<[1], [0], [0], [1], [0, 0, 1, 1], [], []>} : vector<256x128xbf16>, vector<128x128xbf16>, vector<256x128xf32> -> vector<256x128xf32>
    %c0_9 = arith.constant 0 : index
    %c0_10 = arith.constant 0 : index
    %12 = vector.load %arg5[%c0_9, %c0_10] : memref<256x1xf32, #tpu.memory_space<vmem>>, vector<256x1xf32>
    %13 = vector.broadcast %12 : vector<256x1xf32> to vector<256x128xf32>
    %14 = arith.addf %11, %13 : vector<256x128xf32>
    %cst_11 = arith.constant 0.000000e+00 : f32
    %15 = vector.broadcast %cst_11 : f32 to vector<256x128xf32>
    %16 = arith.maximumf %14, %15 : vector<256x128xf32>
    %c0_12 = arith.constant 0 : index
    %c0_13 = arith.constant 0 : index
    %17 = vector.load %arg6[%c0_12, %c0_13] : memref<128x256xbf16, #tpu.memory_space<vmem>>, vector<128x256xbf16>
    %18 = arith.truncf %16 : vector<256x128xf32> to vector<256x128xbf16>
    %cst_14 = arith.constant dense<0.000000e+00> : vector<128x128xf32>
    %19 = tpu.matmul %17, %18, %cst_14 {dimension_numbers = #tpu.dot_dimension_numbers<[1], [0], [0], [1], [0, 0, 1, 1], [], []>} : vector<128x256xbf16>, vector<256x128xbf16>, vector<128x128xf32> -> vector<128x128xf32>
    %c0_15 = arith.constant 0 : index
    %c0_16 = arith.constant 0 : index
    %20 = vector.load %arg7[%c0_15, %c0_16] : memref<128x1xf32, #tpu.memory_space<vmem>>, vector<128x1xf32>
    %21 = vector.broadcast %20 : vector<128x1xf32> to vector<128x128xf32>
    %22 = arith.addf %19, %21 : vector<128x128xf32>
    %cst_17 = arith.constant 0.000000e+00 : f32
    %23 = vector.broadcast %cst_17 : f32 to vector<128x128xf32>
    %24 = arith.maximumf %22, %23 : vector<128x128xf32>
    %c0_18 = arith.constant 0 : index
    %c0_19 = arith.constant 0 : index
    %25 = vector.load %arg8[%c0_18, %c0_19] : memref<4x128xbf16, #tpu.memory_space<vmem>>, vector<4x128xbf16>
    %26 = arith.truncf %24 : vector<128x128xf32> to vector<128x128xbf16>
    %cst_20 = arith.constant dense<0.000000e+00> : vector<4x128xf32>
    %27 = tpu.matmul %25, %26, %cst_20 {dimension_numbers = #tpu.dot_dimension_numbers<[1], [0], [0], [1], [0, 0, 1, 1], [], []>} : vector<4x128xbf16>, vector<128x128xbf16>, vector<4x128xf32> -> vector<4x128xf32>
    %c0_21 = arith.constant 0 : index
    %c0_22 = arith.constant 0 : index
    %28 = vector.load %arg9[%c0_21, %c0_22] : memref<4x1xf32, #tpu.memory_space<vmem>>, vector<4x1xf32>
    %29 = vector.broadcast %28 : vector<4x1xf32> to vector<4x128xf32>
    %30 = arith.addf %27, %29 : vector<4x128xf32>
    %c0_23 = arith.constant 0 : index
    %c0_24 = arith.constant 0 : index
    %31 = vector.load %arg10[%c0_23, %c0_24] : memref<4x128xf32, #tpu.memory_space<vmem>>, vector<4x128xf32>
    tpu.vector_store %arg10[%c0_23, %c0_24], %30 {strides = array<i32>} : memref<4x128xf32, #tpu.memory_space<vmem>>, vector<4x128xf32>,
    return
  }
  func.func @transform_0(%arg0: i32) -> (i32, i32) {
    %c0_i32 = arith.constant 0 : i32
    %c0_i32_0 = arith.constant 0 : i32
    return %arg0, %c0_i32 : i32, i32
  }
  func.func @transform_1(%arg0: i32) -> (i32, i32) {
    %c0_i32 = arith.constant 0 : i32
    %c0_i32_0 = arith.constant 0 : i32
    %c0_i32_1 = arith.constant 0 : i32
    return %c0_i32, %c0_i32_0 : i32, i32
  }
  func.func @transform_2(%arg0: i32) -> (i32, i32) {
    %c0_i32 = arith.constant 0 : i32
    %c0_i32_0 = arith.constant 0 : i32
    %c0_i32_1 = arith.constant 0 : i32
    return %c0_i32, %c0_i32_0 : i32, i32
  }
  func.func @transform_3(%arg0: i32) -> (i32, i32) {
    %c0_i32 = arith.constant 0 : i32
    %c0_i32_0 = arith.constant 0 : i32
    %c0_i32_1 = arith.constant 0 : i32
    return %c0_i32, %c0_i32_0 : i32, i32
  }
  func.func @transform_4(%arg0: i32) -> (i32, i32) {
    %c0_i32 = arith.constant 0 : i32
    %c0_i32_0 = arith.constant 0 : i32
    %c0_i32_1 = arith.constant 0 : i32
    return %c0_i32, %c0_i32_0 : i32, i32
  }
  func.func @transform_5(%arg0: i32) -> (i32, i32) {
    %c0_i32 = arith.constant 0 : i32
    %c0_i32_0 = arith.constant 0 : i32
    %c0_i32_1 = arith.constant 0 : i32
    return %c0_i32, %c0_i32_0 : i32, i32
  }
  func.func @transform_6(%arg0: i32) -> (i32, i32) {
    %c0_i32 = arith.constant 0 : i32
    %c0_i32_0 = arith.constant 0 : i32
    %c0_i32_1 = arith.constant 0 : i32
    return %c0_i32, %c0_i32_0 : i32, i32
  }
  func.func @transform_7(%arg0: i32) -> (i32, i32) {
    %c0_i32 = arith.constant 0 : i32
    %c0_i32_0 = arith.constant 0 : i32
    %c0_i32_1 = arith.constant 0 : i32
    return %c0_i32, %c0_i32_0 : i32, i32
  }
  func.func @transform_8(%arg0: i32) -> (i32, i32) {
    %c0_i32 = arith.constant 0 : i32
    %c0_i32_0 = arith.constant 0 : i32
    %c0_i32_1 = arith.constant 0 : i32
    return %c0_i32, %c0_i32_0 : i32, i32
  }
  func.func @transform_9(%arg0: i32) -> (i32, i32) {
    %c0_i32 = arith.constant 0 : i32
    %c0_i32_0 = arith.constant 0 : i32
    return %c0_i32, %arg0 : i32, i32
  }
}

</mosaic_0001>

<llo_original>
// kernel: tpu_custom_call.1
$region0: #{tpu_custom_call.1}
  #allocation0 [shape = 'u32[]', space=smem, size = 0x4, offset = 0x4, fixed_abs, tag = 'smem constant byte address 0x4 - core index']
  #allocation1 [shape = 'u32[144,128]{1,0:T(1,128)}', space=vmem, size = 0x12000, scoped, tag = 'internal scratch']
  %s0 = inlined_call_operand.vmem [shape: f32[200,8], index: 0, kind: input, shape index: {}]
  %s1 = inlined_call_operand.vmem [shape: bf16[128,8], index: 1, kind: input, shape index: {}]
  %s2 = inlined_call_operand.vmem [shape: f32[128,1], index: 2, kind: input, shape index: {}]
  %s3 = inlined_call_operand.vmem [shape: bf16[256,128], index: 3, kind: input, shape index: {}]
  %s4 = inlined_call_operand.vmem [shape: f32[256,1], index: 4, kind: input, shape index: {}]
  %s5 = inlined_call_operand.vmem [shape: bf16[128,256], index: 5, kind: input, shape index: {}]
  %s6 = inlined_call_operand.vmem [shape: f32[128,1], index: 6, kind: input, shape index: {}]
  %s7 = inlined_call_operand.vmem [shape: bf16[4,128], index: 7, kind: input, shape index: {}]
  %s8 = inlined_call_operand.vmem [shape: f32[4,1], index: 8, kind: input, shape index: {}]
  %s9 = inlined_call_operand.hbm [shape: f32[4,200], index: 9, kind: output, shape index: {}]
  %s10 = sld [smem:[#allocation0]]
  $region69: #{tpu_custom_call.1} parent=0
    _
  %s12 = ssub.s32 1, %s10
  %s13 = scalar_select 0, %s12, %s10
  $region1: #{tpu_custom_call.1} parent=0
    #allocation2 [shape = 'u8[4096]{0}', space=vmem, size = 0x1000, scoped, tag = 'output window, operand 0']
    #allocation3 [shape = 's32[2]{0}', space=sflag, size = 0x8, scoped, tag = 'scoped memory for tpu_custom_call.1']
    %14 = vsyncpa [#allocation3], 0
    %s15 = scalar_lea.sflag [#allocation3], 1
    %16 = vsyncpa %s15, 0
    loop: start=0, step=1, limit=4
    $region2: #{tpu_custom_call.1} parent=1 // loop_pre_header
      _
    $region3: #{tpu_custom_call.1} parent=1 // loop_header
      %s18 = sphi 0, %s22
      %p19 = scmp.ge.s32.totalorder %s18, 4
      %s28 = sphi 0, %s30
      %s31 = sphi 0, %s28
      %s32 = sphi 0, %s31
      %s48 = sphi 0, %s32
      %s52 = sphi 0, %s52
      %s54 = sphi 0, %s52
      %s55 = sphi 0, %s54
      %s69 = sphi 0, %s55
      %s73 = sphi 0, %s73
      %s75 = sphi 0, %s73
      %s76 = sphi 0, %s75
      %s90 = sphi 0, %s76
      %s94 = sphi 0, %s94
      %s96 = sphi 0, %s94
      %s97 = sphi 0, %s96
      %s111 = sphi 0, %s97
      %s115 = sphi 0, %s115
      %s117 = sphi 0, %s115
      %s118 = sphi 0, %s117
      %s132 = sphi 0, %s118
      %s136 = sphi 0, %s136
      %s138 = sphi 0, %s136
      %s139 = sphi 0, %s138
      %s153 = sphi 0, %s139
      %s157 = sphi 0, %s157
      %s159 = sphi 0, %s157
      %s160 = sphi 0, %s159
      %s174 = sphi 0, %s160
      %s178 = sphi 0, %s178
      %s180 = sphi 0, %s178
      %s181 = sphi 0, %s180
      %s195 = sphi 0, %s181
      %s199 = sphi 0, %s199
      %s201 = sphi 0, %s199
      %s202 = sphi 0, %s201
      %s216 = sphi 0, %s202
      %s222 = sphi 0, %s224
      %s225 = sphi 0, %s222
      %s226 = sphi 0, %s225
      %s242 = sphi 0, %s226
    $region4: #{tpu_custom_call.1} parent=1 // loop_header_branch
      %21 = sbr.rel (%p19) target = $region8
    $region5: #{tpu_custom_call.1} parent=1 // loop_body
      %s23 = ssub.s32 %s18, 1
      %s24 = ssub.s32 %s18, 2
      %s25 = sadd.s32 %s18, 1
      %s26 = ssub.s32 %s18, %s25
      %p27 = scmp.eq.s32.totalorder %s26, 0
      %s29 = sadd.s32 %s28, 1
      %s30 = scalar_select %p27, %s28, %s29
      %p33 = pneg %p27
      %p34 = scmp.eq.s32.totalorder %s18, 1
      %p35 = por %p33, %p34
      %p36 = scmp.ne.s32.totalorder %s28, %s31
      %p37 = scmp.eq.s32.totalorder %s18, 0
      %p38 = por %p36, %p37
      %p39 = scmp.ne.s32.totalorder %s28, %s31
      %p40 = scmp.eq.s32.totalorder %s23, 1
      %p41 = por %p39, %p40
      %p42 = scmp.ne.s32.totalorder %s31, %s32
      %p43 = scmp.eq.s32.totalorder %s23, 0
      %p44 = por %p42, %p43
      %p45 = scmp.ne.s32.totalorder %s31, %s32
      %p46 = scmp.eq.s32.totalorder %s24, 1
      %p47 = por %p45, %p46
      %p49 = scmp.ne.s32.totalorder %s32, %s48
      %p50 = scmp.eq.s32.totalorder %s24, 0
      %p51 = por %p49, %p50
      %s53 = sadd.s32 %s52, 1
      %p56 = scmp.eq.s32.totalorder %s18, 1
      %p57 = scmp.ne.s32.totalorder %s52, %s54
      %p58 = scmp.eq.s32.totalorder %s18, 0
      %p59 = por %p57, %p58
      %p60 = scmp.ne.s32.totalorder %s52, %s54
      %p61 = scmp.eq.s32.totalorder %s23, 1
      %p62 = por %p60, %p61
      %p63 = scmp.ne.s32.totalorder %s54, %s55
      %p64 = scmp.eq.s32.totalorder %s23, 0
      %p65 = por %p63, %p64
      %p66 = scmp.ne.s32.totalorder %s54, %s55
      %p67 = scmp.eq.s32.totalorder %s24, 1
      %p68 = por %p66, %p67
      %p70 = scmp.ne.s32.totalorder %s55, %s69
      %p71 = scmp.eq.s32.totalorder %s24, 0
      %p72 = por %p70, %p71
      %s74 = sadd.s32 %s73, 1
      %p77 = scmp.eq.s32.totalorder %s18, 1
      %p78 = scmp.ne.s32.totalorder %s73, %s75
      %p79 = scmp.eq.s32.totalorder %s18, 0
      %p80 = por %p78, %p79
      %p81 = scmp.ne.s32.totalorder %s73, %s75
      %p82 = scmp.eq.s32.totalorder %s23, 1
      %p83 = por %p81, %p82
      %p84 = scmp.ne.s32.totalorder %s75, %s76
      %p85 = scmp.eq.s32.totalorder %s23, 0
      %p86 = por %p84, %p85
      %p87 = scmp.ne.s32.totalorder %s75, %s76
      %p88 = scmp.eq.s32.totalorder %s24, 1
      %p89 = por %p87, %p88
      %p91 = scmp.ne.s32.totalorder %s76, %s90
      %p92 = scmp.eq.s32.totalorder %s24, 0
      %p93 = por %p91, %p92
      %s95 = sadd.s32 %s94, 1
      %p98 = scmp.eq.s32.totalorder %s18, 1
      %p99 = scmp.ne.s32.totalorder %s94, %s96
      %p100 = scmp.eq.s32.totalorder %s18, 0
      %p101 = por %p99, %p100
      %p102 = scmp.ne.s32.totalorder %s94, %s96
      %p103 = scmp.eq.s32.totalorder %s23, 1
      %p104 = por %p102, %p103
      %p105 = scmp.ne.s32.totalorder %s96, %s97
      %p106 = scmp.eq.s32.totalorder %s23, 0
      %p107 = por %p105, %p106
      %p108 = scmp.ne.s32.totalorder %s96, %s97
      %p109 = scmp.eq.s32.totalorder %s24, 1
      %p110 = por %p108, %p109
      %p112 = scmp.ne.s32.totalorder %s97, %s111
      %p113 = scmp.eq.s32.totalorder %s24, 0
      %p114 = por %p112, %p113
      %s116 = sadd.s32 %s115, 1
      %p119 = scmp.eq.s32.totalorder %s18, 1
      %p120 = scmp.ne.s32.totalorder %s115, %s117
      %p121 = scmp.eq.s32.totalorder %s18, 0
      %p122 = por %p120, %p121
      %p123 = scmp.ne.s32.totalorder %s115, %s117
      %p124 = scmp.eq.s32.totalorder %s23, 1
      %p125 = por %p123, %p124
      %p126 = scmp.ne.s32.totalorder %s117, %s118
      %p127 = scmp.eq.s32.totalorder %s23, 0
      %p128 = por %p126, %p127
      %p129 = scmp.ne.s32.totalorder %s117, %s118
      %p130 = scmp.eq.s32.totalorder %s24, 1
      %p131 = por %p129, %p130
      %p133 = scmp.ne.s32.totalorder %s118, %s132
      %p134 = scmp.eq.s32.totalorder %s24, 0
      %p135 = por %p133, %p134
      %s137 = sadd.s32 %s136, 1
      %p140 = scmp.eq.s32.totalorder %s18, 1
      %p141 = scmp.ne.s32.totalorder %s136, %s138
      %p142 = scmp.eq.s32.totalorder %s18, 0
      %p143 = por %p141, %p142
      %p144 = scmp.ne.s32.totalorder %s136, %s138
      %p145 = scmp.eq.s32.totalorder %s23, 1
      %p146 = por %p144, %p145
      %p147 = scmp.ne.s32.totalorder %s138, %s139
      %p148 = scmp.eq.s32.totalorder %s23, 0
      %p149 = por %p147, %p148
      %p150 = scmp.ne.s32.totalorder %s138, %s139
      %p151 = scmp.eq.s32.totalorder %s24, 1
      %p152 = por %p150, %p151
      %p154 = scmp.ne.s32.totalorder %s139, %s153
      %p155 = scmp.eq.s32.totalorder %s24, 0
      %p156 = por %p154, %p155
      %s158 = sadd.s32 %s157, 1
      %p161 = scmp.eq.s32.totalorder %s18, 1
      %p162 = scmp.ne.s32.totalorder %s157, %s159
      %p163 = scmp.eq.s32.totalorder %s18, 0
      %p164 = por %p162, %p163
      %p165 = scmp.ne.s32.totalorder %s157, %s159
      %p166 = scmp.eq.s32.totalorder %s23, 1
      %p167 = por %p165, %p166
      %p168 = scmp.ne.s32.totalorder %s159, %s160
      %p169 = scmp.eq.s32.totalorder %s23, 0
      %p170 = por %p168, %p169
      %p171 = scmp.ne.s32.totalorder %s159, %s160
      %p172 = scmp.eq.s32.totalorder %s24, 1
      %p173 = por %p171, %p172
      %p175 = scmp.ne.s32.totalorder %s160, %s174
      %p176 = scmp.eq.s32.totalorder %s24, 0
      %p177 = por %p175, %p176
      %s179 = sadd.s32 %s178, 1
      %p182 = scmp.eq.s32.totalorder %s18, 1
      %p183 = scmp.ne.s32.totalorder %s178, %s180
      %p184 = scmp.eq.s32.totalorder %s18, 0
      %p185 = por %p183, %p184
      %p186 = scmp.ne.s32.totalorder %s178, %s180
      %p187 = scmp.eq.s32.totalorder %s23, 1
      %p188 = por %p186, %p187
      %p189 = scmp.ne.s32.totalorder %s180, %s181
      %p190 = scmp.eq.s32.totalorder %s23, 0
      %p191 = por %p189, %p190
      %p192 = scmp.ne.s32.totalorder %s180, %s181
      %p193 = scmp.eq.s32.totalorder %s24, 1
      %p194 = por %p192, %p193
      %p196 = scmp.ne.s32.totalorder %s181, %s195
      %p197 = scmp.eq.s32.totalorder %s24, 0
      %p198 = por %p196, %p197
      %s200 = sadd.s32 %s199, 1
      %p203 = scmp.eq.s32.totalorder %s18, 1
      %p204 = scmp.ne.s32.totalorder %s199, %s201
      %p205 = scmp.eq.s32.totalorder %s18, 0
      %p206 = por %p204, %p205
      %p207 = scmp.ne.s32.totalorder %s199, %s201
      %p208 = scmp.eq.s32.totalorder %s23, 1
      %p209 = por %p207, %p208
      %p210 = scmp.ne.s32.totalorder %s201, %s202
      %p211 = scmp.eq.s32.totalorder %s23, 0
      %p212 = por %p210, %p211
      %p213 = scmp.ne.s32.totalorder %s201, %s202
      %p214 = scmp.eq.s32.totalorder %s24, 1
      %p215 = por %p213, %p214
      %p217 = scmp.ne.s32.totalorder %s202, %s216
      %p218 = scmp.eq.s32.totalorder %s24, 0
      %p219 = por %p217, %p218
      %s220 = ssub.s32 %s18, %s25
      %p221 = scmp.eq.s32.totalorder %s220, 0
      %s223 = sadd.s32 %s222, 1
      %s224 = scalar_select %p221, %s222, %s223
      %p227 = pneg %p221
      %p228 = scmp.eq.s32.totalorder %s18, 1
      %p229 = por %p227, %p228
      %p230 = scmp.ne.s32.totalorder %s222, %s225
      %p231 = scmp.eq.s32.totalorder %s18, 0
      %p232 = por %p230, %p231
      %p233 = scmp.ne.s32.totalorder %s222, %s225
      %p234 = scmp.eq.s32.totalorder %s23, 1
      %p235 = por %p233, %p234
      %p236 = scmp.ne.s32.totalorder %s225, %s226
      %p237 = scmp.eq.s32.totalorder %s23, 0
      %p238 = por %p236, %p237
      %p239 = scmp.ne.s32.totalorder %s225, %s226
      %p240 = scmp.eq.s32.totalorder %s24, 1
      %p241 = por %p239, %p240
      %p243 = scmp.ne.s32.totalorder %s226, %s242
      %p244 = scmp.eq.s32.totalorder %s24, 0
      %p245 = por %p243, %p244
      %p246 = scmp.le.s32.totalorder 1, %s18
      %p247 = scmp.lt.s32.totalorder %s18, 3
      %p248 = pnand %p246, %p247
      %p249 = pneg %p248
      // Predicated region
      $region9: #{tpu_custom_call.1} parent=5 // pred_check
        _
      $region10: #{tpu_custom_call.1} parent=5 // pred_check_branch
        %251 = sbr.rel (%p248) target = $region12
      $region11: #{tpu_custom_call.1} parent=5 // pred_region
        %s252 = ssub.s32 %s18, 1
        // Predicated region
        $region13: #{tpu_custom_call.1} parent=11 // pred_check
          %p253 = pneg %p65
        $region14: #{tpu_custom_call.1} parent=11 // pred_check_branch
          %255 = sbr.rel (%p253) target = $region16
        $region15: #{tpu_custom_call.1} parent=11 // pred_region
          _
        $region16: #{tpu_custom_call.1} parent=11 // pred_fallthru
          _
        // Predicated region
        $region17: #{tpu_custom_call.1} parent=11 // pred_check
          %p256 = pneg %p86
        $region18: #{tpu_custom_call.1} parent=11 // pred_check_branch
          %258 = sbr.rel (%p256) target = $region20
        $region19: #{tpu_custom_call.1} parent=11 // pred_region
          _
        $region20: #{tpu_custom_call.1} parent=11 // pred_fallthru
          _
        // Predicated region
        $region21: #{tpu_custom_call.1} parent=11 // pred_check
          %p259 = pneg %p107
        $region22: #{tpu_custom_call.1} parent=11 // pred_check_branch
          %261 = sbr.rel (%p259) target = $region24
        $region23: #{tpu_custom_call.1} parent=11 // pred_region
          _
        $region24: #{tpu_custom_call.1} parent=11 // pred_fallthru
          _
        // Predicated region
        $region25: #{tpu_custom_call.1} parent=11 // pred_check
          %p262 = pneg %p128
        $region26: #{tpu_custom_call.1} parent=11 // pred_check_branch
          %264 = sbr.rel (%p262) target = $region28
        $region27: #{tpu_custom_call.1} parent=11 // pred_region
          _
        $region28: #{tpu_custom_call.1} parent=11 // pred_fallthru
          _
        // Predicated region
        $region29: #{tpu_custom_call.1} parent=11 // pred_check
          %p265 = pneg %p149
        $region30: #{tpu_custom_call.1} parent=11 // pred_check_branch
          %267 = sbr.rel (%p265) target = $region32
        $region31: #{tpu_custom_call.1} parent=11 // pred_region
          _
        $region32: #{tpu_custom_call.1} parent=11 // pred_fallthru
          _
        // Predicated region
        $region33: #{tpu_custom_call.1} parent=11 // pred_check
          %p268 = pneg %p170
        $region34: #{tpu_custom_call.1} parent=11 // pred_check_branch
          %270 = sbr.rel (%p268) target = $region36
        $region35: #{tpu_custom_call.1} parent=11 // pred_region
          _
        $region36: #{tpu_custom_call.1} parent=11 // pred_fallthru
          _
        // Predicated region
        $region37: #{tpu_custom_call.1} parent=11 // pred_check
          %p271 = pneg %p191
        $region38: #{tpu_custom_call.1} parent=11 // pred_check_branch
          %273 = sbr.rel (%p271) target = $region40
        $region39: #{tpu_custom_call.1} parent=11 // pred_region
          _
        $region40: #{tpu_custom_call.1} parent=11 // pred_fallthru
          _
        // Predicated region
        $region41: #{tpu_custom_call.1} parent=11 // pred_check
          %p274 = pneg %p212
        $region42: #{tpu_custom_call.1} parent=11 // pred_check_branch
          %276 = sbr.rel (%p274) target = $region44
        $region43: #{tpu_custom_call.1} parent=11 // pred_region
          _
        $region44: #{tpu_custom_call.1} parent=11 // pred_fallthru
          _
      $region12: #{tpu_custom_call.1} parent=5 // pred_fallthru
        _
      %p277 = scmp.lt.s32.totalorder %s18, 2
      // Predicated region
      $region45: #{tpu_custom_call.1} parent=5 // pred_check
        %p278 = pneg %p277
      $region46: #{tpu_custom_call.1} parent=5 // pred_check_branch
        %280 = sbr.rel (%p278) target = $region48
      $region47: #{tpu_custom_call.1} parent=5 // pred_region
        // Predicated region
        $region49: #{tpu_custom_call.1} parent=47 // pred_check
          %p281 = pneg %p38
        $region50: #{tpu_custom_call.1} parent=47 // pred_check_branch
          %283 = sbr.rel (%p281) target = $region52
        $region51: #{tpu_custom_call.1} parent=47 // pred_region
          %s284 = smul.u32 16, %s18
          %s285 = ssub.s32 25, %s284
          %p286 = scmp.lt.s32.totalorder %s285, 16
          %s287 = scalar_select %p286, %s285, 16
          %s288 = smul.u32 128, %s287
          %p289 = scmp.lt.s32.totalorder %s284, 24
          %s290 = scalar_select %p289, %s284, 24
          %s291 = smul.addr %s290, 8
          %s292 = scalar_lea.vmem %s0, %s291
          %s293 = smul.u32 16, %s18
          %s294 = ssub.s32 25, %s293
          %p295 = scmp.lt.s32.totalorder %s294, 16
          %s296 = scalar_select %p295, %s294, 16
          %s297 = smul.u32 128, %s296
        $region52: #{tpu_custom_call.1} parent=47 // pred_fallthru
          _
      $region48: #{tpu_custom_call.1} parent=5 // pred_fallthru
        _
      %p298 = scmp.le.s32.totalorder 1, %s18
      %p299 = scmp.lt.s32.totalorder %s18, 3
      %p300 = pnand %p298, %p299
      %p301 = pneg %p300
      // Predicated region
      $region53: #{tpu_custom_call.1} parent=5 // pred_check
        _
      $region54: #{tpu_custom_call.1} parent=5 // pred_check_branch
        %303 = sbr.rel (%p300) target = $region56
      $region55: #{tpu_custom_call.1} parent=5 // pred_region
        %s304 = ssub.s32 %s18, 1
        %s305 = smul.u32 16, %s23
        %s306 = ssub.s32 25, %s305
        %p307 = scmp.lt.s32.totalorder %s306, 16
        %s308 = scalar_select %p307, %s306, 16
        %s309 = smul.u32 128, %s308
        %p310 = scmp.lt.s32.totalorder %s305, 24
        %s311 = scalar_select %p310, %s305, 24
        %s312 = smul.addr %s311, 8
        %s313 = scalar_lea.vmem %s0, %s312
        %p314 = pneg %p44
        %p315 = pneg %p41
        %p316 = pneg %p65
        %p317 = pneg %p62
        %p318 = pneg %p86
        %p319 = pneg %p83
        %p320 = pneg %p107
        %p321 = pneg %p104
        %p322 = pneg %p128
        %p323 = pneg %p125
        %p324 = pneg %p149
        %p325 = pneg %p146
        %p326 = pneg %p170
        %p327 = pneg %p167
        %p328 = pneg %p191
        %p329 = pneg %p188
        %p330 = pneg %p212
        %p331 = pneg %p209
        %p332 = pneg %p238
        %p333 = pneg %p235
        %s334 = sand.u32 %s225, 1
        %s335 = scalar_lea.sflag [#allocation3], %s334
        %s336 = sand.u32 %s225, 1
        %s337 = smul.addr %s336, 4
        %s338 = scalar_lea.vmem [#allocation2], %s337
        %s339 = smul.u32 16, %s23
        %s340 = ssub.s32 25, %s339
        %p341 = scmp.lt.s32.totalorder %s340, 16
        %s342 = scalar_select %p341, %s340, 16
        %s343 = smul.u32 128, %s342
        %p344 = scmp.lt.s32.totalorder %s339, 24
        %s345 = scalar_select %p344, %s339, 24
        %s346 = smul.addr %s345, 8
        %s347 = scalar_lea.vmem %s0, %s346
        %s348 = smul.u32 16, %s23
        %s349 = ssub.s32 25, %s348
        %p350 = scmp.lt.s32.totalorder %s349, 16
        %s351 = scalar_select %p350, %s349, 16
        %s352 = smul.u32 128, %s351
        %v354 = vld [vmem:[%s347] sm:$0xff]
        %v355 = vld [vmem:[%s347 + $0x8] sm:$0xff]
        %v356 = vld [vmem:[%s347 + $0x10] sm:$0xff]
        %v357 = vld [vmem:[%s347 + $0x18] sm:$0xff]
        %v358 = vld [vmem:[%s347 + $0x20] sm:$0xff]
        %v359 = vld [vmem:[%s347 + $0x28] sm:$0xff]
        %v360 = vld [vmem:[%s347 + $0x30] sm:$0xff]
        %v361 = vld [vmem:[%s347 + $0x38] sm:$0xff]
        %v362 = vld [vmem:[%s347 + $0x40] sm:$0xff]
        %v363 = vld [vmem:[%s347 + $0x48] sm:$0xff]
        %v364 = vld [vmem:[%s347 + $0x50] sm:$0xff]
        %v365 = vld [vmem:[%s347 + $0x58] sm:$0xff]
        %v366 = vld [vmem:[%s347 + $0x60] sm:$0xff]
        %v367 = vld [vmem:[%s347 + $0x68] sm:$0xff]
        %v368 = vld [vmem:[%s347 + $0x70] sm:$0xff]
        %v369 = vld [vmem:[%s347 + $0x78] sm:$0xff]
        %v370 = vpack.c.bf16 %v355, %v354
        %v371 = vpack.c.bf16 %v357, %v356
        %v372 = vpack.c.bf16 %v359, %v358
        %v373 = vpack.c.bf16 %v361, %v360
        %v374 = vpack.c.bf16 %v363, %v362
        %v375 = vpack.c.bf16 %v365, %v364
        %v376 = vpack.c.bf16 %v367, %v366
        %v377 = vpack.c.bf16 %v369, %v368
        %v378 = vld [vmem:[%s1] sm:$0xf]
        %v379 = vld [vmem:[%s1 + $0x4] sm:$0xf]
        %v380 = vld [vmem:[%s1 + $0x8] sm:$0xf]
        %v381 = vld [vmem:[%s1 + $0xc] sm:$0xf]
        %v382 = vld [vmem:[%s1 + $0x10] sm:$0xf]
        %v383 = vld [vmem:[%s1 + $0x14] sm:$0xf]
        %v384 = vld [vmem:[%s1 + $0x18] sm:$0xf]
        %v385 = vld [vmem:[%s1 + $0x1c] sm:$0xf]
        %v386 = vld [vmem:[%s1 + $0x20] sm:$0xf]
        %v387 = vld [vmem:[%s1 + $0x24] sm:$0xf]
        %v388 = vld [vmem:[%s1 + $0x28] sm:$0xf]
        %v389 = vld [vmem:[%s1 + $0x2c] sm:$0xf]
        %v390 = vld [vmem:[%s1 + $0x30] sm:$0xf]
        %v391 = vld [vmem:[%s1 + $0x34] sm:$0xf]
        %v392 = vld [vmem:[%s1 + $0x38] sm:$0xf]
        %v393 = vld [vmem:[%s1 + $0x3c] sm:$0xf]
        %v394 = vld [vmem:[%s2] sm:$0xff]
        %v395 = vld [vmem:[%s2 + $0x8] sm:$0xff]
        %v396 = vld [vmem:[%s2 + $0x10] sm:$0xff]
        %v397 = vld [vmem:[%s2 + $0x18] sm:$0xff]
        %v398 = vld [vmem:[%s2 + $0x20] sm:$0xff]
        %v399 = vld [vmem:[%s2 + $0x28] sm:$0xff]
        %v400 = vld [vmem:[%s2 + $0x30] sm:$0xff]
        %v401 = vld [vmem:[%s2 + $0x38] sm:$0xff]
        %v402 = vld [vmem:[%s2 + $0x40] sm:$0xff]
        %v403 = vld [vmem:[%s2 + $0x48] sm:$0xff]
        %v404 = vld [vmem:[%s2 + $0x50] sm:$0xff]
        %v405 = vld [vmem:[%s2 + $0x58] sm:$0xff]
        %v406 = vld [vmem:[%s2 + $0x60] sm:$0xff]
        %v407 = vld [vmem:[%s2 + $0x68] sm:$0xff]
        %v408 = vld [vmem:[%s2 + $0x70] sm:$0xff]
        %v409 = vld [vmem:[%s2 + $0x78] sm:$0xff]
        %411 = vset.pattern.permute.xlu0 0
        %412 = vperm.xlu0 %411, %v394
        %v413 = vpop.permute.xlu0 %412
        %416 = vset.pattern.permute.xlu0 0
        %417 = vperm.xlu0 %416, %v395
        %v418 = vpop.permute.xlu0 %417
        %421 = vset.pattern.permute.xlu0 0
        %422 = vperm.xlu0 %421, %v396
        %v423 = vpop.permute.xlu0 %422
        %426 = vset.pattern.permute.xlu0 0
        %427 = vperm.xlu0 %426, %v397
        %v428 = vpop.permute.xlu0 %427
        %431 = vset.pattern.permute.xlu0 0
        %432 = vperm.xlu0 %431, %v398
        %v433 = vpop.permute.xlu0 %432
        %436 = vset.pattern.permute.xlu0 0
        %437 = vperm.xlu0 %436, %v399
        %v438 = vpop.permute.xlu0 %437
        %441 = vset.pattern.permute.xlu0 0
        %442 = vperm.xlu0 %441, %v400
        %v443 = vpop.permute.xlu0 %442
        %446 = vset.pattern.permute.xlu0 0
        %447 = vperm.xlu0 %446, %v401
        %v448 = vpop.permute.xlu0 %447
        %451 = vset.pattern.permute.xlu0 0
        %452 = vperm.xlu0 %451, %v402
        %v453 = vpop.permute.xlu0 %452
        %456 = vset.pattern.permute.xlu0 0
        %457 = vperm.xlu0 %456, %v403
        %v458 = vpop.permute.xlu0 %457
        %461 = vset.pattern.permute.xlu0 0
        %462 = vperm.xlu0 %461, %v404
        %v463 = vpop.permute.xlu0 %462
        %466 = vset.pattern.permute.xlu0 0
        %467 = vperm.xlu0 %466, %v405
        %v468 = vpop.permute.xlu0 %467
        %471 = vset.pattern.permute.xlu0 0
        %472 = vperm.xlu0 %471, %v406
        %v473 = vpop.permute.xlu0 %472
        %476 = vset.pattern.permute.xlu0 0
        %477 = vperm.xlu0 %476, %v407
        %v478 = vpop.permute.xlu0 %477
        %481 = vset.pattern.permute.xlu0 0
        %482 = vperm.xlu0 %481, %v408
        %v483 = vpop.permute.xlu0 %482
        %486 = vset.pattern.permute.xlu0 0
        %487 = vperm.xlu0 %486, %v409
        %v488 = vpop.permute.xlu0 %487
        %v506 = vunpack.c.l.b16 %v378
        %v507 = vunpack.c.l.b16 %v379
        %v508 = vunpack.c.l.b16 %v380
        %v509 = vunpack.c.l.b16 %v381
        %v510 = vunpack.c.l.b16 %v382
        %v511 = vunpack.c.l.b16 %v383
        %v512 = vunpack.c.l.b16 %v384
        %v513 = vunpack.c.l.b16 %v385
        %v514 = vunpack.c.l.b16 %v386
        %v515 = vunpack.c.l.b16 %v387
        %v516 = vunpack.c.l.b16 %v388
        %v517 = vunpack.c.l.b16 %v389
        %v518 = vunpack.c.l.b16 %v390
        %v519 = vunpack.c.l.b16 %v391
        %v520 = vunpack.c.l.b16 %v392
        %v521 = vunpack.c.l.b16 %v393
        %v522 = vpack.c.b16 %v507, %v506
        %v523 = vpack.c.b16 %v509, %v508
        %v524 = vpack.c.b16 %v511, %v510
        %v525 = vpack.c.b16 %v513, %v512
        %v526 = vpack.c.b16 %v515, %v514
        %v527 = vpack.c.b16 %v517, %v516
        %v528 = vpack.c.b16 %v519, %v518
        %v529 = vpack.c.b16 %v521, %v520
        %vm530 = vcmask 64512
        %v532 = vsel %vm530, %v522, 0
        %v535 = vsel %vm530, %v523, 0
        %v538 = vsel %vm530, %v524, 0
        %v541 = vsel %vm530, %v525, 0
        %v544 = vsel %vm530, %v526, 0
        %v547 = vsel %vm530, %v527, 0
        %v550 = vsel %vm530, %v528, 0
        %v553 = vsel %vm530, %v529, 0
        %v556 = vsel %vm530, %v370, 0
        %v559 = vsel %vm530, %v371, 0
        %v562 = vsel %vm530, %v372, 0
        %v565 = vsel %vm530, %v373, 0
        %v568 = vsel %vm530, %v374, 0
        %v571 = vsel %vm530, %v375, 0
        %v574 = vsel %vm530, %v376, 0
        %v577 = vsel %vm530, %v377, 0
        %579 = vmatprep.subr.bf16.mxu0 0
        %580 = vmatpush1.bf16.xpose.msra.mxu0 %v556
        %581 = vmatprep.subr.bf16.mxu0 0
        %582 = vmatpush1.bf16.xpose.msra.mxu0 %v559
        %583 = vmatprep.subr.bf16.mxu0 0
        %584 = vmatpush1.bf16.xpose.msra.mxu0 %v562
        %585 = vmatprep.subr.bf16.mxu0 0
        %586 = vmatpush1.bf16.xpose.msra.mxu0 %v565
        %587 = vmatprep.subr.bf16.mxu0 0
        %588 = vmatpush1.bf16.xpose.msra.mxu0 %v568
        %589 = vmatprep.subr.bf16.mxu0 0
        %590 = vmatpush1.bf16.xpose.msra.mxu0 %v571
        %591 = vmatprep.subr.bf16.mxu0 0
        %592 = vmatpush1.bf16.xpose.msra.mxu0 %v574
        %593 = vmatprep.subr.bf16.mxu0 0
        %594 = vmatpush1.bf16.xpose.msra.mxu0 %v577
        %595 = vmatprep.subr.bf16.mxu0 0
        %596 = vmatpush1.bf16.xpose.msra.mxu0 0
        %597 = vmatprep.subr.bf16.mxu0 0
        %598 = vmatpush1.bf16.xpose.msra.mxu0 0
        %599 = vmatprep.subr.bf16.mxu0 0
        %600 = vmatpush1.bf16.xpose.msra.mxu0 0
        %601 = vmatprep.subr.bf16.mxu0 0
        %602 = vmatpush1.bf16.xpose.msra.mxu0 0
        %603 = vmatprep.subr.bf16.mxu0 0
        %604 = vmatpush1.bf16.xpose.msra.mxu0 0
        %605 = vmatprep.subr.bf16.mxu0 0
        %606 = vmatpush1.bf16.xpose.msra.mxu0 0
        %607 = vmatprep.subr.bf16.mxu0 0
        %608 = vmatpush1.bf16.xpose.msra.mxu0 0
        %609 = vmatprep.subr.bf16.mxu0 0
        %610 = vmatpush1.bf16.xpose.msra.mxu0 0
        %611 = vmatprep.mubr.bf16.mxu0 0
        %612 = vmatmul.mubr.bf16.gmra.mrb[0].mxu0 %v532
        %v613 = vpop.f32.mrb[0].mxu0
        %v614 = vadd.f32 %v413, %v613
        %v615 = vpop.f32.mrb[0].mxu0
        %v616 = vpop.f32.mrb[0].mxu0
        %v617 = vadd.f32 %v418, %v616
        %v618 = vpop.f32.mrb[0].mxu0
        %619 = vmatprep.mubr.bf16.mxu0 0
        %620 = vmatmul.mubr.bf16.gmra.mrb[0].mxu0 %v535
        %v621 = vpop.f32.mrb[0].mxu0
        %v622 = vadd.f32 %v423, %v621
        %v623 = vpop.f32.mrb[0].mxu0
        %v624 = vpop.f32.mrb[0].mxu0
        %v625 = vadd.f32 %v428, %v624
        %v626 = vpop.f32.mrb[0].mxu0
        %627 = vmatprep.mubr.bf16.mxu0 0
        %628 = vmatmul.mubr.bf16.gmra.mrb[0].mxu0 %v538
        %v629 = vpop.f32.mrb[0].mxu0
        %v630 = vadd.f32 %v433, %v629
        %v631 = vpop.f32.mrb[0].mxu0
        %v632 = vpop.f32.mrb[0].mxu0
        %v633 = vadd.f32 %v438, %v632
        %v634 = vpop.f32.mrb[0].mxu0
        %635 = vmatprep.mubr.bf16.mxu0 0
        %636 = vmatmul.mubr.bf16.gmra.mrb[0].mxu0 %v541
        %v637 = vpop.f32.mrb[0].mxu0
        %v638 = vadd.f32 %v443, %v637
        %v639 = vpop.f32.mrb[0].mxu0
        %v640 = vpop.f32.mrb[0].mxu0
        %v641 = vadd.f32 %v448, %v640
        %v642 = vpop.f32.mrb[0].mxu0
        %643 = vmatprep.mubr.bf16.mxu0 0
        %644 = vmatmul.mubr.bf16.gmra.mrb[0].mxu0 %v544
        %v645 = vpop.f32.mrb[0].mxu0
        %v646 = vadd.f32 %v453, %v645
        %v647 = vpop.f32.mrb[0].mxu0
        %v648 = vpop.f32.mrb[0].mxu0
        %v649 = vadd.f32 %v458, %v648
        %v650 = vpop.f32.mrb[0].mxu0
        %651 = vmatprep.mubr.bf16.mxu0 0
        %652 = vmatmul.mubr.bf16.gmra.mrb[0].mxu0 %v547
        %v653 = vpop.f32.mrb[0].mxu0
        %v654 = vadd.f32 %v463, %v653
        %v655 = vpop.f32.mrb[0].mxu0
        %v656 = vpop.f32.mrb[0].mxu0
        %v657 = vadd.f32 %v468, %v656
        %v658 = vpop.f32.mrb[0].mxu0
        %659 = vmatprep.mubr.bf16.mxu0 0
        %660 = vmatmul.mubr.bf16.gmra.mrb[0].mxu0 %v550
        %v661 = vpop.f32.mrb[0].mxu0
        %v662 = vadd.f32 %v473, %v661
        %v663 = vpop.f32.mrb[0].mxu0
        %v664 = vpop.f32.mrb[0].mxu0
        %v665 = vadd.f32 %v478, %v664
        %v666 = vpop.f32.mrb[0].mxu0
        %667 = vmatprep.mubr.bf16.mxu0 0
        %668 = vmatmul.mubr.bf16.gmra.mrb[0].mxu0 %v553
        %v669 = vpop.f32.mrb[0].mxu0
        %v670 = vadd.f32 %v483, %v669
        %v671 = vpop.f32.mrb[0].mxu0
        %v672 = vpop.f32.mrb[0].mxu0
        %v673 = vadd.f32 %v488, %v672
        %v674 = vpop.f32.mrb[0].mxu0
        %675 = vdwg.mxu0
        %v676 = vmax.f32 %v614, 0.0
        %v677 = vmax.f32 %v617, 0.0
        %v678 = vmax.f32 %v622, 0.0
        %v679 = vmax.f32 %v625, 0.0
        %v680 = vmax.f32 %v630, 0.0
        %v681 = vmax.f32 %v633, 0.0
        %v682 = vmax.f32 %v638, 0.0
        %v683 = vmax.f32 %v641, 0.0
        %v684 = vmax.f32 %v646, 0.0
        %v685 = vmax.f32 %v649, 0.0
        %v686 = vmax.f32 %v654, 0.0
        %v687 = vmax.f32 %v657, 0.0
        %v688 = vmax.f32 %v662, 0.0
        %v689 = vmax.f32 %v665, 0.0
        %v690 = vmax.f32 %v670, 0.0
        %v691 = vmax.f32 %v673, 0.0
        %v692 = vld [vmem:[%s3] sm:$0xf]
        %v693 = vld [vmem:[%s3 + $0x4] sm:$0xf]
        %v694 = vld [vmem:[%s3 + $0x8] sm:$0xf]
        %v695 = vld [vmem:[%s3 + $0xc] sm:$0xf]
        %v696 = vld [vmem:[%s3 + $0x10] sm:$0xf]
        %v697 = vld [vmem:[%s3 + $0x14] sm:$0xf]
        %v698 = vld [vmem:[%s3 + $0x18] sm:$0xf]
        %v699 = vld [vmem:[%s3 + $0x1c] sm:$0xf]
        %v700 = vld [vmem:[%s3 + $0x20] sm:$0xf]
        %v701 = vld [vmem:[%s3 + $0x24] sm:$0xf]
        %v702 = vld [vmem:[%s3 + $0x28] sm:$0xf]
        %v703 = vld [vmem:[%s3 + $0x2c] sm:$0xf]
        %v704 = vld [vmem:[%s3 + $0x30] sm:$0xf]
        %v705 = vld [vmem:[%s3 + $0x34] sm:$0xf]
        %v706 = vld [vmem:[%s3 + $0x38] sm:$0xf]
        %v707 = vld [vmem:[%s3 + $0x3c] sm:$0xf]
        %v708 = vld [vmem:[%s3 + $0x40] sm:$0xf]
        %v709 = vld [vmem:[%s3 + $0x44] sm:$0xf]
        %v710 = vld [vmem:[%s3 + $0x48] sm:$0xf]
        %v711 = vld [vmem:[%s3 + $0x4c] sm:$0xf]
        %v712 = vld [vmem:[%s3 + $0x50] sm:$0xf]
        %v713 = vld [vmem:[%s3 + $0x54] sm:$0xf]
        %v714 = vld [vmem:[%s3 + $0x58] sm:$0xf]
        %v715 = vld [vmem:[%s3 + $0x5c] sm:$0xf]
        %v716 = vld [vmem:[%s3 + $0x60] sm:$0xf]
        %v717 = vld [vmem:[%s3 + $0x64] sm:$0xf]
        %v718 = vld [vmem:[%s3 + $0x68] sm:$0xf]
        %v719 = vld [vmem:[%s3 + $0x6c] sm:$0xf]
        %v720 = vld [vmem:[%s3 + $0x70] sm:$0xf]
        %v721 = vld [vmem:[%s3 + $0x74] sm:$0xf]
        %v722 = vld [vmem:[%s3 + $0x78] sm:$0xf]
        %v723 = vld [vmem:[%s3 + $0x7c] sm:$0xf]
        %v724 = vpack.c.bf16 %v677, %v676
        %v725 = vpack.c.bf16 %v679, %v678
        %v726 = vpack.c.bf16 %v681, %v680
        %v727 = vpack.c.bf16 %v683, %v682
        %v728 = vpack.c.bf16 %v685, %v684
        %v729 = vpack.c.bf16 %v687, %v686
        %v730 = vpack.c.bf16 %v689, %v688
        %v731 = vpack.c.bf16 %v691, %v690
        %v732 = vld [vmem:[%s4] sm:$0xff]
        %v733 = vld [vmem:[%s4 + $0x8] sm:$0xff]
        %v734 = vld [vmem:[%s4 + $0x10] sm:$0xff]
        %v735 = vld [vmem:[%s4 + $0x18] sm:$0xff]
        %v736 = vld [vmem:[%s4 + $0x20] sm:$0xff]
        %v737 = vld [vmem:[%s4 + $0x28] sm:$0xff]
        %v738 = vld [vmem:[%s4 + $0x30] sm:$0xff]
        %v739 = vld [vmem:[%s4 + $0x38] sm:$0xff]
        %v740 = vld [vmem:[%s4 + $0x40] sm:$0xff]
        %v741 = vld [vmem:[%s4 + $0x48] sm:$0xff]
        %v742 = vld [vmem:[%s4 + $0x50] sm:$0xff]
        %v743 = vld [vmem:[%s4 + $0x58] sm:$0xff]
        %v744 = vld [vmem:[%s4 + $0x60] sm:$0xff]
        %v745 = vld [vmem:[%s4 + $0x68] sm:$0xff]
        %v746 = vld [vmem:[%s4 + $0x70] sm:$0xff]
        %v747 = vld [vmem:[%s4 + $0x78] sm:$0xff]
        %v748 = vld [vmem:[%s4 + $0x80] sm:$0xff]
        %v749 = vld [vmem:[%s4 + $0x88] sm:$0xff]
        %v750 = vld [vmem:[%s4 + $0x90] sm:$0xff]
        %v751 = vld [vmem:[%s4 + $0x98] sm:$0xff]
        %v752 = vld [vmem:[%s4 + $0xa0] sm:$0xff]
        %v753 = vld [vmem:[%s4 + $0xa8] sm:$0xff]
        %v754 = vld [vmem:[%s4 + $0xb0] sm:$0xff]
        %v755 = vld [vmem:[%s4 + $0xb8] sm:$0xff]
        %v756 = vld [vmem:[%s4 + $0xc0] sm:$0xff]
        %v757 = vld [vmem:[%s4 + $0xc8] sm:$0xff]
        %v758 = vld [vmem:[%s4 + $0xd0] sm:$0xff]
        %v759 = vld [vmem:[%s4 + $0xd8] sm:$0xff]
        %v760 = vld [vmem:[%s4 + $0xe0] sm:$0xff]
        %v761 = vld [vmem:[%s4 + $0xe8] sm:$0xff]
        %v762 = vld [vmem:[%s4 + $0xf0] sm:$0xff]
        %v763 = vld [vmem:[%s4 + $0xf8] sm:$0xff]
        %765 = vset.pattern.permute.xlu0 0
        %766 = vperm.xlu0 %765, %v732
        %v767 = vpop.permute.xlu0 %766
        %770 = vset.pattern.permute.xlu0 0
        %771 = vperm.xlu0 %770, %v733
        %v772 = vpop.permute.xlu0 %771
        %775 = vset.pattern.permute.xlu0 0
        %776 = vperm.xlu0 %775, %v734
        %v777 = vpop.permute.xlu0 %776
        %780 = vset.pattern.permute.xlu0 0
        %781 = vperm.xlu0 %780, %v735
        %v782 = vpop.permute.xlu0 %781
        %785 = vset.pattern.permute.xlu0 0
        %786 = vperm.xlu0 %785, %v736
        %v787 = vpop.permute.xlu0 %786
        %790 = vset.pattern.permute.xlu0 0
        %791 = vperm.xlu0 %790, %v737
        %v792 = vpop.permute.xlu0 %791
        %795 = vset.pattern.permute.xlu0 0
        %796 = vperm.xlu0 %795, %v738
        %v797 = vpop.permute.xlu0 %796
        %800 = vset.pattern.permute.xlu0 0
        %801 = vperm.xlu0 %800, %v739
        %v802 = vpop.permute.xlu0 %801
        %805 = vset.pattern.permute.xlu0 0
        %806 = vperm.xlu0 %805, %v740
        %v807 = vpop.permute.xlu0 %806
        %810 = vset.pattern.permute.xlu0 0
        %811 = vperm.xlu0 %810, %v741
        %v812 = vpop.permute.xlu0 %811
        %815 = vset.pattern.permute.xlu0 0
        %816 = vperm.xlu0 %815, %v742
        %v817 = vpop.permute.xlu0 %816
        %820 = vset.pattern.permute.xlu0 0
        %821 = vperm.xlu0 %820, %v743
        %v822 = vpop.permute.xlu0 %821
        %825 = vset.pattern.permute.xlu0 0
        %826 = vperm.xlu0 %825, %v744
        %v827 = vpop.permute.xlu0 %826
        %830 = vset.pattern.permute.xlu0 0
        %831 = vperm.xlu0 %830, %v745
        %v832 = vpop.permute.xlu0 %831
        %835 = vset.pattern.permute.xlu0 0
        %836 = vperm.xlu0 %835, %v746
        %v837 = vpop.permute.xlu0 %836
        %840 = vset.pattern.permute.xlu0 0
        %841 = vperm.xlu0 %840, %v747
        %v842 = vpop.permute.xlu0 %841
        %845 = vset.pattern.permute.xlu0 0
        %846 = vperm.xlu0 %845, %v748
        %v847 = vpop.permute.xlu0 %846
        %850 = vset.pattern.permute.xlu0 0
        %851 = vperm.xlu0 %850, %v749
        %v852 = vpop.permute.xlu0 %851
        %855 = vset.pattern.permute.xlu0 0
        %856 = vperm.xlu0 %855, %v750
        %v857 = vpop.permute.xlu0 %856
        %860 = vset.pattern.permute.xlu0 0
        %861 = vperm.xlu0 %860, %v751
        %v862 = vpop.permute.xlu0 %861
        %865 = vset.pattern.permute.xlu0 0
        %866 = vperm.xlu0 %865, %v752
        %v867 = vpop.permute.xlu0 %866
        %870 = vset.pattern.permute.xlu0 0
        %871 = vperm.xlu0 %870, %v753
        %v872 = vpop.permute.xlu0 %871
        %875 = vset.pattern.permute.xlu0 0
        %876 = vperm.xlu0 %875, %v754
        %v877 = vpop.permute.xlu0 %876
        %880 = vset.pattern.permute.xlu0 0
        %881 = vperm.xlu0 %880, %v755
        %v882 = vpop.permute.xlu0 %881
        %885 = vset.pattern.permute.xlu0 0
        %886 = vperm.xlu0 %885, %v756
        %v887 = vpop.permute.xlu0 %886
        %890 = vset.pattern.permute.xlu0 0
        %891 = vperm.xlu0 %890, %v757
        %v892 = vpop.permute.xlu0 %891
        %895 = vset.pattern.permute.xlu0 0
        %896 = vperm.xlu0 %895, %v758
        %v897 = vpop.permute.xlu0 %896
        %900 = vset.pattern.permute.xlu0 0
        %901 = vperm.xlu0 %900, %v759
        %v902 = vpop.permute.xlu0 %901
        %905 = vset.pattern.permute.xlu0 0
        %906 = vperm.xlu0 %905, %v760
        %v907 = vpop.permute.xlu0 %906
        %910 = vset.pattern.permute.xlu0 0
        %911 = vperm.xlu0 %910, %v761
        %v912 = vpop.permute.xlu0 %911
        %915 = vset.pattern.permute.xlu0 0
        %916 = vperm.xlu0 %915, %v762
        %v917 = vpop.permute.xlu0 %916
        %920 = vset.pattern.permute.xlu0 0
        %921 = vperm.xlu0 %920, %v763
        %v922 = vpop.permute.xlu0 %921
        %v956 = vunpack.c.l.b16 %v692
        %v957 = vunpack.c.l.b16 %v693
        %v958 = vunpack.c.l.b16 %v694
        %v959 = vunpack.c.l.b16 %v695
        %v960 = vunpack.c.l.b16 %v696
        %v961 = vunpack.c.l.b16 %v697
        %v962 = vunpack.c.l.b16 %v698
        %v963 = vunpack.c.l.b16 %v699
        %v964 = vunpack.c.l.b16 %v700
        %v965 = vunpack.c.l.b16 %v701
        %v966 = vunpack.c.l.b16 %v702
        %v967 = vunpack.c.l.b16 %v703
        %v968 = vunpack.c.l.b16 %v704
        %v969 = vunpack.c.l.b16 %v705
        %v970 = vunpack.c.l.b16 %v706
        %v971 = vunpack.c.l.b16 %v707
        %v972 = vunpack.c.l.b16 %v708
        %v973 = vunpack.c.l.b16 %v709
        %v974 = vunpack.c.l.b16 %v710
        %v975 = vunpack.c.l.b16 %v711
        %v976 = vunpack.c.l.b16 %v712
        %v977 = vunpack.c.l.b16 %v713
        %v978 = vunpack.c.l.b16 %v714
        %v979 = vunpack.c.l.b16 %v715
        %v980 = vunpack.c.l.b16 %v716
        %v981 = vunpack.c.l.b16 %v717
        %v982 = vunpack.c.l.b16 %v718
        %v983 = vunpack.c.l.b16 %v719
        %v984 = vunpack.c.l.b16 %v720
        %v985 = vunpack.c.l.b16 %v721
        %v986 = vunpack.c.l.b16 %v722
        %v987 = vunpack.c.l.b16 %v723
        %v988 = vpack.c.b16 %v957, %v956
        %v989 = vpack.c.b16 %v959, %v958
        %v990 = vpack.c.b16 %v961, %v960
        %v991 = vpack.c.b16 %v963, %v962
        %v992 = vpack.c.b16 %v965, %v964
        %v993 = vpack.c.b16 %v967, %v966
        %v994 = vpack.c.b16 %v969, %v968
        %v995 = vpack.c.b16 %v971, %v970
        %v996 = vpack.c.b16 %v973, %v972
        %v997 = vpack.c.b16 %v975, %v974
        %v998 = vpack.c.b16 %v977, %v976
        %v999 = vpack.c.b16 %v979, %v978
        %v1000 = vpack.c.b16 %v981, %v980
        %v1001 = vpack.c.b16 %v983, %v982
        %v1002 = vpack.c.b16 %v985, %v984
        %v1003 = vpack.c.b16 %v987, %v986
        %1020 = vmatprep.subr.bf16.mxu0 0
        %1021 = vmatpush1.bf16.msra.mxu0 %v724
        %1022 = vmatprep.subr.bf16.mxu0 0
        %1023 = vmatpush1.bf16.msra.mxu0 %v725
        %1024 = vmatprep.subr.bf16.mxu0 0
        %1025 = vmatpush1.bf16.msra.mxu0 %v726
        %1026 = vmatprep.subr.bf16.mxu0 0
        %1027 = vmatpush1.bf16.msra.mxu0 %v727
        %1028 = vmatprep.subr.bf16.mxu0 0
        %1029 = vmatpush1.bf16.msra.mxu0 %v728
        %1030 = vmatprep.subr.bf16.mxu0 0
        %1031 = vmatpush1.bf16.msra.mxu0 %v729
        %1032 = vmatprep.subr.bf16.mxu0 0
        %1033 = vmatpush1.bf16.msra.mxu0 %v730
        %1034 = vmatprep.subr.bf16.mxu0 0
        %1035 = vmatpush1.bf16.msra.mxu0 %v731
        %1036 = vmatprep.subr.bf16.mxu0 0
        %1037 = vmatpush1.bf16.msra.mxu0 0
        %1038 = vmatprep.subr.bf16.mxu0 0
        %1039 = vmatpush1.bf16.msra.mxu0 0
        %1040 = vmatprep.subr.bf16.mxu0 0
        %1041 = vmatpush1.bf16.msra.mxu0 0
        %1042 = vmatprep.subr.bf16.mxu0 0
        %1043 = vmatpush1.bf16.msra.mxu0 0
        %1044 = vmatprep.subr.bf16.mxu0 0
        %1045 = vmatpush1.bf16.msra.mxu0 0
        %1046 = vmatprep.subr.bf16.mxu0 0
        %1047 = vmatpush1.bf16.msra.mxu0 0
        %1048 = vmatprep.subr.bf16.mxu0 0
        %1049 = vmatpush1.bf16.msra.mxu0 0
        %1050 = vmatprep.subr.bf16.mxu0 0
        %1051 = vmatpush1.bf16.msra.mxu0 0
        %1052 = vmatprep.mubr.bf16.mxu0 0
        %1053 = vmatmul.mubr.bf16.gmra.mrb[0].mxu0 %v988
        %v1054 = vpop.f32.mrb[0].mxu0
        %v1055 = vadd.f32 %v767, %v1054
        %v1056 = vpop.f32.mrb[0].mxu0
        %v1057 = vpop.f32.mrb[0].mxu0
        %v1058 = vadd.f32 %v772, %v1057
        %v1059 = vpop.f32.mrb[0].mxu0
        %1060 = vmatprep.mubr.bf16.mxu0 0
        %1061 = vmatmul.mubr.bf16.gmra.mrb[0].mxu0 %v989
        %v1062 = vpop.f32.mrb[0].mxu0
        %v1063 = vadd.f32 %v777, %v1062
        %v1064 = vpop.f32.mrb[0].mxu0
        %v1065 = vpop.f32.mrb[0].mxu0
        %v1066 = vadd.f32 %v782, %v1065
        %v1067 = vpop.f32.mrb[0].mxu0
        %1068 = vmatprep.mubr.bf16.mxu0 0
        %1069 = vmatmul.mubr.bf16.gmra.mrb[0].mxu0 %v990
        %v1070 = vpop.f32.mrb[0].mxu0
        %v1071 = vadd.f32 %v787, %v1070
        %v1072 = vpop.f32.mrb[0].mxu0
        %v1073 = vpop.f32.mrb[0].mxu0
        %v1074 = vadd.f32 %v792, %v1073
        %v1075 = vpop.f32.mrb[0].mxu0
        %1076 = vmatprep.mubr.bf16.mxu0 0
        %1077 = vmatmul.mubr.bf16.gmra.mrb[0].mxu0 %v991
        %v1078 = vpop.f32.mrb[0].mxu0
        %v1079 = vadd.f32 %v797, %v1078
        %v1080 = vpop.f32.mrb[0].mxu0
        %v1081 = vpop.f32.mrb[0].mxu0
        %v1082 = vadd.f32 %v802, %v1081
        %v1083 = vpop.f32.mrb[0].mxu0
        %1084 = vmatprep.mubr.bf16.mxu0 0
        %1085 = vmatmul.mubr.bf16.gmra.mrb[0].mxu0 %v992
        %v1086 = vpop.f32.mrb[0].mxu0
        %v1087 = vadd.f32 %v807, %v1086
        %v1088 = vpop.f32.mrb[0].mxu0
        %v1089 = vpop.f32.mrb[0].mxu0
        %v1090 = vadd.f32 %v812, %v1089
        %v1091 = vpop.f32.mrb[0].mxu0
        %1092 = vmatprep.mubr.bf16.mxu0 0
        %1093 = vmatmul.mubr.bf16.gmra.mrb[0].mxu0 %v993
        %v1094 = vpop.f32.mrb[0].mxu0
        %v1095 = vadd.f32 %v817, %v1094
        %v1096 = vpop.f32.mrb[0].mxu0
        %v1097 = vpop.f32.mrb[0].mxu0
        %v1098 = vadd.f32 %v822, %v1097
        %v1099 = vpop.f32.mrb[0].mxu0
        %1100 = vmatprep.mubr.bf16.mxu0 0
        %1101 = vmatmul.mubr.bf16.gmra.mrb[0].mxu0 %v994
        %v1102 = vpop.f32.mrb[0].mxu0
        %v1103 = vadd.f32 %v827, %v1102
        %v1104 = vpop.f32.mrb[0].mxu0
        %v1105 = vpop.f32.mrb[0].mxu0
        %v1106 = vadd.f32 %v832, %v1105
        %v1107 = vpop.f32.mrb[0].mxu0
        %1108 = vmatprep.mubr.bf16.mxu0 0
        %1109 = vmatmul.mubr.bf16.gmra.mrb[0].mxu0 %v995
        %v1110 = vpop.f32.mrb[0].mxu0
        %v1111 = vadd.f32 %v837, %v1110
        %v1112 = vpop.f32.mrb[0].mxu0
        %v1113 = vpop.f32.mrb[0].mxu0
        %v1114 = vadd.f32 %v842, %v1113
        %v1115 = vpop.f32.mrb[0].mxu0
        %1116 = vmatprep.mubr.bf16.mxu0 0
        %1117 = vmatmul.mubr.bf16.gmra.mrb[0].mxu0 %v996
        %v1118 = vpop.f32.mrb[0].mxu0
        %v1119 = vadd.f32 %v847, %v1118
        %v1120 = vpop.f32.mrb[0].mxu0
        %v1121 = vpop.f32.mrb[0].mxu0
        %v1122 = vadd.f32 %v852, %v1121
        %v1123 = vpop.f32.mrb[0].mxu0
        %1124 = vmatprep.mubr.bf16.mxu0 0
        %1125 = vmatmul.mubr.bf16.gmra.mrb[0].mxu0 %v997
        %v1126 = vpop.f32.mrb[0].mxu0
        %v1127 = vadd.f32 %v857, %v1126
        %v1128 = vpop.f32.mrb[0].mxu0
        %v1129 = vpop.f32.mrb[0].mxu0
        %v1130 = vadd.f32 %v862, %v1129
        %v1131 = vpop.f32.mrb[0].mxu0
        %1132 = vmatprep.mubr.bf16.mxu0 0
        %1133 = vmatmul.mubr.bf16.gmra.mrb[0].mxu0 %v998
        %v1134 = vpop.f32.mrb[0].mxu0
        %v1135 = vadd.f32 %v867, %v1134
        %v1136 = vpop.f32.mrb[0].mxu0
        %v1137 = vpop.f32.mrb[0].mxu0
        %v1138 = vadd.f32 %v872, %v1137
        %v1139 = vpop.f32.mrb[0].mxu0
        %1140 = vmatprep.mubr.bf16.mxu0 0
        %1141 = vmatmul.mubr.bf16.gmra.mrb[0].mxu0 %v999
        %v1142 = vpop.f32.mrb[0].mxu0
        %v1143 = vadd.f32 %v877, %v1142
        %v1144 = vpop.f32.mrb[0].mxu0
        %v1145 = vpop.f32.mrb[0].mxu0
        %v1146 = vadd.f32 %v882, %v1145
        %v1147 = vpop.f32.mrb[0].mxu0
        %1148 = vmatprep.mubr.bf16.mxu0 0
        %1149 = vmatmul.mubr.bf16.gmra.mrb[0].mxu0 %v1000
        %v1150 = vpop.f32.mrb[0].mxu0
        %v1151 = vadd.f32 %v887, %v1150
        %v1152 = vpop.f32.mrb[0].mxu0
        %v1153 = vpop.f32.mrb[0].mxu0
        %v1154 = vadd.f32 %v892, %v1153
        %v1155 = vpop.f32.mrb[0].mxu0
        %1156 = vmatprep.mubr.bf16.mxu0 0
        %1157 = vmatmul.mubr.bf16.gmra.mrb[0].mxu0 %v1001
        %v1158 = vpop.f32.mrb[0].mxu0
        %v1159 = vadd.f32 %v897, %v1158
        %v1160 = vpop.f32.mrb[0].mxu0
        %v1161 = vpop.f32.mrb[0].mxu0
        %v1162 = vadd.f32 %v902, %v1161
        %v1163 = vpop.f32.mrb[0].mxu0
        %1164 = vmatprep.mubr.bf16.mxu0 0
        %1165 = vmatmul.mubr.bf16.gmra.mrb[0].mxu0 %v1002
        %v1166 = vpop.f32.mrb[0].mxu0
        %v1167 = vadd.f32 %v907, %v1166
        %v1168 = vpop.f32.mrb[0].mxu0
        %v1169 = vpop.f32.mrb[0].mxu0
        %v1170 = vadd.f32 %v912, %v1169
        %v1171 = vpop.f32.mrb[0].mxu0
        %1172 = vmatprep.mubr.bf16.mxu0 0
        %1173 = vmatmul.mubr.bf16.gmra.mrb[0].mxu0 %v1003
        %v1174 = vpop.f32.mrb[0].mxu0
        %v1175 = vadd.f32 %v917, %v1174
        %v1176 = vpop.f32.mrb[0].mxu0
        %v1177 = vpop.f32.mrb[0].mxu0
        %v1178 = vadd.f32 %v922, %v1177
        %v1179 = vpop.f32.mrb[0].mxu0
        %1180 = vdwg.mxu0
        %v1181 = vmax.f32 %v1055, 0.0
        %v1182 = vmax.f32 %v1058, 0.0
        %v1183 = vmax.f32 %v1063, 0.0
        %v1184 = vmax.f32 %v1066, 0.0
        %v1185 = vmax.f32 %v1071, 0.0
        %v1186 = vmax.f32 %v1074, 0.0
        %v1187 = vmax.f32 %v1079, 0.0
        %v1188 = vmax.f32 %v1082, 0.0
        %v1189 = vmax.f32 %v1087, 0.0
        %v1190 = vmax.f32 %v1090, 0.0
        %v1191 = vmax.f32 %v1095, 0.0
        %v1192 = vmax.f32 %v1098, 0.0
        %v1193 = vmax.f32 %v1103, 0.0
        %v1194 = vmax.f32 %v1106, 0.0
        %v1195 = vmax.f32 %v1111, 0.0
        %v1196 = vmax.f32 %v1114, 0.0
        %v1197 = vmax.f32 %v1119, 0.0
        %v1198 = vmax.f32 %v1122, 0.0
        %v1199 = vmax.f32 %v1127, 0.0
        %v1200 = vmax.f32 %v1130, 0.0
        %v1201 = vmax.f32 %v1135, 0.0
        %v1202 = vmax.f32 %v1138, 0.0
        %v1203 = vmax.f32 %v1143, 0.0
        %v1204 = vmax.f32 %v1146, 0.0
        %v1205 = vmax.f32 %v1151, 0.0
        %v1206 = vmax.f32 %v1154, 0.0
        %v1207 = vmax.f32 %v1159, 0.0
        %v1208 = vmax.f32 %v1162, 0.0
        %v1209 = vmax.f32 %v1167, 0.0
        %v1210 = vmax.f32 %v1170, 0.0
        %v1211 = vmax.f32 %v1175, 0.0
        %v1212 = vmax.f32 %v1178, 0.0
        %v1213 = vld [vmem:[%s5] sm:$0xff]
        %v1214 = vld [vmem:[%s5 + $0x8] sm:$0xff]
        %v1215 = vld [vmem:[%s5 + $0x10] sm:$0xff]
        %v1216 = vld [vmem:[%s5 + $0x18] sm:$0xff]
        %v1217 = vld [vmem:[%s5 + $0x20] sm:$0xff]
        %v1218 = vld [vmem:[%s5 + $0x28] sm:$0xff]
        %v1219 = vld [vmem:[%s5 + $0x30] sm:$0xff]
        %v1220 = vld [vmem:[%s5 + $0x38] sm:$0xff]
        %v1221 = vld [vmem:[%s5 + $0x40] sm:$0xff]
        %v1222 = vld [vmem:[%s5 + $0x48] sm:$0xff]
        %v1223 = vld [vmem:[%s5 + $0x50] sm:$0xff]
        %v1224 = vld [vmem:[%s5 + $0x58] sm:$0xff]
        %v1225 = vld [vmem:[%s5 + $0x60] sm:$0xff]
        %v1226 = vld [vmem:[%s5 + $0x68] sm:$0xff]
        %v1227 = vld [vmem:[%s5 + $0x70] sm:$0xff]
        %v1228 = vld [vmem:[%s5 + $0x78] sm:$0xff]
        %v1229 = vpack.c.bf16 %v1182, %v1181
        %v1230 = vpack.c.bf16 %v1184, %v1183
        %v1231 = vpack.c.bf16 %v1186, %v1185
        %v1232 = vpack.c.bf16 %v1188, %v1187
        %v1233 = vpack.c.bf16 %v1190, %v1189
        %v1234 = vpack.c.bf16 %v1192, %v1191
        %v1235 = vpack.c.bf16 %v1194, %v1193
        %v1236 = vpack.c.bf16 %v1196, %v1195
        %v1237 = vpack.c.bf16 %v1198, %v1197
        %v1238 = vpack.c.bf16 %v1200, %v1199
        %v1239 = vpack.c.bf16 %v1202, %v1201
        %v1240 = vpack.c.bf16 %v1204, %v1203
        %v1241 = vpack.c.bf16 %v1206, %v1205
        %v1242 = vpack.c.bf16 %v1208, %v1207
        %v1243 = vpack.c.bf16 %v1210, %v1209
        %v1244 = vpack.c.bf16 %v1212, %v1211
        %v1245 = vld [vmem:[%s6] sm:$0xff]
        %v1246 = vld [vmem:[%s6 + $0x8] sm:$0xff]
        %v1247 = vld [vmem:[%s6 + $0x10] sm:$0xff]
        %v1248 = vld [vmem:[%s6 + $0x18] sm:$0xff]
        %v1249 = vld [vmem:[%s6 + $0x20] sm:$0xff]
        %v1250 = vld [vmem:[%s6 + $0x28] sm:$0xff]
        %v1251 = vld [vmem:[%s6 + $0x30] sm:$0xff]
        %v1252 = vld [vmem:[%s6 + $0x38] sm:$0xff]
        %v1253 = vld [vmem:[%s6 + $0x40] sm:$0xff]
        %v1254 = vld [vmem:[%s6 + $0x48] sm:$0xff]
        %v1255 = vld [vmem:[%s6 + $0x50] sm:$0xff]
        %v1256 = vld [vmem:[%s6 + $0x58] sm:$0xff]
        %v1257 = vld [vmem:[%s6 + $0x60] sm:$0xff]
        %v1258 = vld [vmem:[%s6 + $0x68] sm:$0xff]
        %v1259 = vld [vmem:[%s6 + $0x70] sm:$0xff]
        %v1260 = vld [vmem:[%s6 + $0x78] sm:$0xff]
        %1262 = vset.pattern.permute.xlu0 0
        %1263 = vperm.xlu0 %1262, %v1245
        %v1264 = vpop.permute.xlu0 %1263
        %1267 = vset.pattern.permute.xlu0 0
        %1268 = vperm.xlu0 %1267, %v1246
        %v1269 = vpop.permute.xlu0 %1268
        %1272 = vset.pattern.permute.xlu0 0
        %1273 = vperm.xlu0 %1272, %v1247
        %v1274 = vpop.permute.xlu0 %1273
        %1277 = vset.pattern.permute.xlu0 0
        %1278 = vperm.xlu0 %1277, %v1248
        %v1279 = vpop.permute.xlu0 %1278
        %1282 = vset.pattern.permute.xlu0 0
        %1283 = vperm.xlu0 %1282, %v1249
        %v1284 = vpop.permute.xlu0 %1283
        %1287 = vset.pattern.permute.xlu0 0
        %1288 = vperm.xlu0 %1287, %v1250
        %v1289 = vpop.permute.xlu0 %1288
        %1292 = vset.pattern.permute.xlu0 0
        %1293 = vperm.xlu0 %1292, %v1251
        %v1294 = vpop.permute.xlu0 %1293
        %1297 = vset.pattern.permute.xlu0 0
        %1298 = vperm.xlu0 %1297, %v1252
        %v1299 = vpop.permute.xlu0 %1298
        %1302 = vset.pattern.permute.xlu0 0
        %1303 = vperm.xlu0 %1302, %v1253
        %v1304 = vpop.permute.xlu0 %1303
        %1307 = vset.pattern.permute.xlu0 0
        %1308 = vperm.xlu0 %1307, %v1254
        %v1309 = vpop.permute.xlu0 %1308
        %1312 = vset.pattern.permute.xlu0 0
        %1313 = vperm.xlu0 %1312, %v1255
        %v1314 = vpop.permute.xlu0 %1313
        %1317 = vset.pattern.permute.xlu0 0
        %1318 = vperm.xlu0 %1317, %v1256
        %v1319 = vpop.permute.xlu0 %1318
        %1322 = vset.pattern.permute.xlu0 0
        %1323 = vperm.xlu0 %1322, %v1257
        %v1324 = vpop.permute.xlu0 %1323
        %1327 = vset.pattern.permute.xlu0 0
        %1328 = vperm.xlu0 %1327, %v1258
        %v1329 = vpop.permute.xlu0 %1328
        %1332 = vset.pattern.permute.xlu0 0
        %1333 = vperm.xlu0 %1332, %v1259
        %v1334 = vpop.permute.xlu0 %1333
        %1337 = vset.pattern.permute.xlu0 0
        %1338 = vperm.xlu0 %1337, %v1260
        %v1339 = vpop.permute.xlu0 %1338
        %v1357 = vunpack.c.l.b16 %v1213
        %v1358 = vunpack.c.h.b16 %v1213
        %v1359 = vunpack.c.l.b16 %v1214
        %v1360 = vunpack.c.h.b16 %v1214
        %v1361 = vunpack.c.l.b16 %v1215
        %v1362 = vunpack.c.h.b16 %v1215
        %v1363 = vunpack.c.l.b16 %v1216
        %v1364 = vunpack.c.h.b16 %v1216
        %v1365 = vunpack.c.l.b16 %v1217
        %v1366 = vunpack.c.h.b16 %v1217
        %v1367 = vunpack.c.l.b16 %v1218
        %v1368 = vunpack.c.h.b16 %v1218
        %v1369 = vunpack.c.l.b16 %v1219
        %v1370 = vunpack.c.h.b16 %v1219
        %v1371 = vunpack.c.l.b16 %v1220
        %v1372 = vunpack.c.h.b16 %v1220
        %v1373 = vunpack.c.l.b16 %v1221
        %v1374 = vunpack.c.h.b16 %v1221
        %v1375 = vunpack.c.l.b16 %v1222
        %v1376 = vunpack.c.h.b16 %v1222
        %v1377 = vunpack.c.l.b16 %v1223
        %v1378 = vunpack.c.h.b16 %v1223
        %v1379 = vunpack.c.l.b16 %v1224
        %v1380 = vunpack.c.h.b16 %v1224
        %v1381 = vunpack.c.l.b16 %v1225
        %v1382 = vunpack.c.h.b16 %v1225
        %v1383 = vunpack.c.l.b16 %v1226
        %v1384 = vunpack.c.h.b16 %v1226
        %v1385 = vunpack.c.l.b16 %v1227
        %v1386 = vunpack.c.h.b16 %v1227
        %v1387 = vunpack.c.l.b16 %v1228
        %v1388 = vunpack.c.h.b16 %v1228
        %v1389 = vpack.c.b16 %v1359, %v1357
        %v1390 = vpack.c.b16 %v1360, %v1358
        %v1391 = vpack.c.b16 %v1363, %v1361
        %v1392 = vpack.c.b16 %v1364, %v1362
        %v1393 = vpack.c.b16 %v1367, %v1365
        %v1394 = vpack.c.b16 %v1368, %v1366
        %v1395 = vpack.c.b16 %v1371, %v1369
        %v1396 = vpack.c.b16 %v1372, %v1370
        %v1397 = vpack.c.b16 %v1375, %v1373
        %v1398 = vpack.c.b16 %v1376, %v1374
        %v1399 = vpack.c.b16 %v1379, %v1377
        %v1400 = vpack.c.b16 %v1380, %v1378
        %v1401 = vpack.c.b16 %v1383, %v1381
        %v1402 = vpack.c.b16 %v1384, %v1382
        %v1403 = vpack.c.b16 %v1387, %v1385
        %v1404 = vpack.c.b16 %v1388, %v1386
        %1421 = vmatprep.subr.bf16.mxu0 0
        %1422 = vmatpush1.bf16.msra.mxu0 %v1229
        %1423 = vmatprep.subr.bf16.mxu0 0
        %1424 = vmatpush1.bf16.msra.mxu0 %v1230
        %1425 = vmatprep.subr.bf16.mxu0 0
        %1426 = vmatpush1.bf16.msra.mxu0 %v1231
        %1427 = vmatprep.subr.bf16.mxu0 0
        %1428 = vmatpush1.bf16.msra.mxu0 %v1232
        %1429 = vmatprep.subr.bf16.mxu0 0
        %1430 = vmatpush1.bf16.msra.mxu0 %v1233
        %1431 = vmatprep.subr.bf16.mxu0 0
        %1432 = vmatpush1.bf16.msra.mxu0 %v1234
        %1433 = vmatprep.subr.bf16.mxu0 0
        %1434 = vmatpush1.bf16.msra.mxu0 %v1235
        %1435 = vmatprep.subr.bf16.mxu0 0
        %1436 = vmatpush1.bf16.msra.mxu0 %v1236
        %1437 = vmatprep.subr.bf16.mxu0 0
        %1438 = vmatpush1.bf16.msra.mxu0 %v1237
        %1439 = vmatprep.subr.bf16.mxu0 0
        %1440 = vmatpush1.bf16.msra.mxu0 %v1238
        %1441 = vmatprep.subr.bf16.mxu0 0
        %1442 = vmatpush1.bf16.msra.mxu0 %v1239
        %1443 = vmatprep.subr.bf16.mxu0 0
        %1444 = vmatpush1.bf16.msra.mxu0 %v1240
        %1445 = vmatprep.subr.bf16.mxu0 0
        %1446 = vmatpush1.bf16.msra.mxu0 %v1241
        %1447 = vmatprep.subr.bf16.mxu0 0
        %1448 = vmatpush1.bf16.msra.mxu0 %v1242
        %1449 = vmatprep.subr.bf16.mxu0 0
        %1450 = vmatpush1.bf16.msra.mxu0 %v1243
        %1451 = vmatprep.subr.bf16.mxu0 0
        %1452 = vmatpush1.bf16.msra.mxu0 %v1244
        %1453 = vmatprep.mubr.bf16.mxu0 %v1390
        %1454 = vmatmul.mubr.bf16.gmra.mrb[0].mxu0 %v1389
        %v1455 = vpop.f32.mrb[0].mxu0
        %v1456 = vadd.f32 %v1264, %v1455
        %v1457 = vpop.f32.mrb[0].mxu0
        %v1458 = vpop.f32.mrb[0].mxu0
        %v1459 = vadd.f32 %v1269, %v1458
        %v1460 = vpop.f32.mrb[0].mxu0
        %1461 = vmatprep.mubr.bf16.mxu0 %v1392
        %1462 = vmatmul.mubr.bf16.gmra.mrb[0].mxu0 %v1391
        %v1463 = vpop.f32.mrb[0].mxu0
        %v1464 = vadd.f32 %v1274, %v1463
        %v1465 = vpop.f32.mrb[0].mxu0
        %v1466 = vpop.f32.mrb[0].mxu0
        %v1467 = vadd.f32 %v1279, %v1466
        %v1468 = vpop.f32.mrb[0].mxu0
        %1469 = vmatprep.mubr.bf16.mxu0 %v1394
        %1470 = vmatmul.mubr.bf16.gmra.mrb[0].mxu0 %v1393
        %v1471 = vpop.f32.mrb[0].mxu0
        %v1472 = vadd.f32 %v1284, %v1471
        %v1473 = vpop.f32.mrb[0].mxu0
        %v1474 = vpop.f32.mrb[0].mxu0
        %v1475 = vadd.f32 %v1289, %v1474
        %v1476 = vpop.f32.mrb[0].mxu0
        %1477 = vmatprep.mubr.bf16.mxu0 %v1396
        %1478 = vmatmul.mubr.bf16.gmra.mrb[0].mxu0 %v1395
        %v1479 = vpop.f32.mrb[0].mxu0
        %v1480 = vadd.f32 %v1294, %v1479
        %v1481 = vpop.f32.mrb[0].mxu0
        %v1482 = vpop.f32.mrb[0].mxu0
        %v1483 = vadd.f32 %v1299, %v1482
        %v1484 = vpop.f32.mrb[0].mxu0
        %1485 = vmatprep.mubr.bf16.mxu0 %v1398
        %1486 = vmatmul.mubr.bf16.gmra.mrb[0].mxu0 %v1397
        %v1487 = vpop.f32.mrb[0].mxu0
        %v1488 = vadd.f32 %v1304, %v1487
        %v1489 = vpop.f32.mrb[0].mxu0
        %v1490 = vpop.f32.mrb[0].mxu0
        %v1491 = vadd.f32 %v1309, %v1490
        %v1492 = vpop.f32.mrb[0].mxu0
        %1493 = vmatprep.mubr.bf16.mxu0 %v1400
        %1494 = vmatmul.mubr.bf16.gmra.mrb[0].mxu0 %v1399
        %v1495 = vpop.f32.mrb[0].mxu0
        %v1496 = vadd.f32 %v1314, %v1495
        %v1497 = vpop.f32.mrb[0].mxu0
        %v1498 = vpop.f32.mrb[0].mxu0
        %v1499 = vadd.f32 %v1319, %v1498
        %v1500 = vpop.f32.mrb[0].mxu0
        %1501 = vmatprep.mubr.bf16.mxu0 %v1402
        %1502 = vmatmul.mubr.bf16.gmra.mrb[0].mxu0 %v1401
        %v1503 = vpop.f32.mrb[0].mxu0
        %v1504 = vadd.f32 %v1324, %v1503
        %v1505 = vpop.f32.mrb[0].mxu0
        %v1506 = vpop.f32.mrb[0].mxu0
        %v1507 = vadd.f32 %v1329, %v1506
        %v1508 = vpop.f32.mrb[0].mxu0
        %1509 = vmatprep.mubr.bf16.mxu0 %v1404
        %1510 = vmatmul.mubr.bf16.gmra.mrb[0].mxu0 %v1403
        %v1511 = vpop.f32.mrb[0].mxu0
        %v1512 = vadd.f32 %v1334, %v1511
        %v1513 = vpop.f32.mrb[0].mxu0
        %v1514 = vpop.f32.mrb[0].mxu0
        %v1515 = vadd.f32 %v1339, %v1514
        %v1516 = vpop.f32.mrb[0].mxu0
        %1517 = vdwg.mxu0
        %v1518 = vmax.f32 %v1456, 0.0
        %v1519 = vmax.f32 %v1459, 0.0
        %v1520 = vmax.f32 %v1464, 0.0
        %v1521 = vmax.f32 %v1467, 0.0
        %v1522 = vmax.f32 %v1472, 0.0
        %v1523 = vmax.f32 %v1475, 0.0
        %v1524 = vmax.f32 %v1480, 0.0
        %v1525 = vmax.f32 %v1483, 0.0
        %v1526 = vmax.f32 %v1488, 0.0
        %v1527 = vmax.f32 %v1491, 0.0
        %v1528 = vmax.f32 %v1496, 0.0
        %v1529 = vmax.f32 %v1499, 0.0
        %v1530 = vmax.f32 %v1504, 0.0
        %v1531 = vmax.f32 %v1507, 0.0
        %v1532 = vmax.f32 %v1512, 0.0
        %v1533 = vmax.f32 %v1515, 0.0
        %v1534 = vld [vmem:[%s7] sm:$0x3]
        %v1535 = vpack.c.bf16 %v1519, %v1518
        %v1536 = vpack.c.bf16 %v1521, %v1520
        %v1537 = vpack.c.bf16 %v1523, %v1522
        %v1538 = vpack.c.bf16 %v1525, %v1524
        %v1539 = vpack.c.bf16 %v1527, %v1526
        %v1540 = vpack.c.bf16 %v1529, %v1528
        %v1541 = vpack.c.bf16 %v1531, %v1530
        %v1542 = vpack.c.bf16 %v1533, %v1532
        %v1543 = vld [vmem:[%s8] sm:$0xf]
        %1545 = vset.pattern.permute.xlu0 0
        %1546 = vperm.xlu0 %1545, %v1543
        %v1547 = vpop.permute.xlu0 %1546
        %1549 = vmatprep.subr.bf16.mxu0 0
        %1550 = vmatpush1.bf16.msra.mxu0 %v1535
        %1551 = vmatprep.subr.bf16.mxu0 0
        %1552 = vmatpush1.bf16.msra.mxu0 %v1536
        %1553 = vmatprep.subr.bf16.mxu0 0
        %1554 = vmatpush1.bf16.msra.mxu0 %v1537
        %1555 = vmatprep.subr.bf16.mxu0 0
        %1556 = vmatpush1.bf16.msra.mxu0 %v1538
        %1557 = vmatprep.subr.bf16.mxu0 0
        %1558 = vmatpush1.bf16.msra.mxu0 %v1539
        %1559 = vmatprep.subr.bf16.mxu0 0
        %1560 = vmatpush1.bf16.msra.mxu0 %v1540
        %1561 = vmatprep.subr.bf16.mxu0 0
        %1562 = vmatpush1.bf16.msra.mxu0 %v1541
        %1563 = vmatprep.subr.bf16.mxu0 0
        %1564 = vmatpush1.bf16.msra.mxu0 %v1542
        %1565 = vmatprep.subr.bf16.mxu0 0
        %1566 = vmatpush1.bf16.msra.mxu0 0
        %1567 = vmatprep.subr.bf16.mxu0 0
        %1568 = vmatpush1.bf16.msra.mxu0 0
        %1569 = vmatprep.subr.bf16.mxu0 0
        %1570 = vmatpush1.bf16.msra.mxu0 0
        %1571 = vmatprep.subr.bf16.mxu0 0
        %1572 = vmatpush1.bf16.msra.mxu0 0
        %1573 = vmatprep.subr.bf16.mxu0 0
        %1574 = vmatpush1.bf16.msra.mxu0 0
        %1575 = vmatprep.subr.bf16.mxu0 0
        %1576 = vmatpush1.bf16.msra.mxu0 0
        %1577 = vmatprep.subr.bf16.mxu0 0
        %1578 = vmatpush1.bf16.msra.mxu0 0
        %1579 = vmatprep.subr.bf16.mxu0 0
        %1580 = vmatpush1.bf16.msra.mxu0 0
        %1581 = vmatprep.mubr.bf16.mxu0 0
        %1582 = vmatmul.mubr.bf16.gmra.mrb[0].mxu0 %v1534
        %v1583 = vpop.f32.mrb[0].mxu0
        %v1584 = vadd.f32 %v1547, %v1583
        %v1585 = vpop.f32.mrb[0].mxu0
        %v1586 = vpop.f32.mrb[0].mxu0
        %v1587 = vpop.f32.mrb[0].mxu0
        %1588 = vdwg.mxu0
        %1589 = vst [vmem:[%s338] sm:$0xf] %v1584
        %s1590 = sand.u32 %s225, 1
        %s1591 = scalar_lea.sflag [#allocation3], %s1590
        %s1592 = sand.u32 %s225, 1
        %s1593 = smul.addr %s1592, 4
        %s1594 = scalar_lea.vmem [#allocation2], %s1593
        // Predicated region
        $region57: #{tpu_custom_call.1} parent=55 // pred_check
          %p1595 = pneg %p235
        $region58: #{tpu_custom_call.1} parent=55 // pred_check_branch
          %1597 = sbr.rel (%p1595) target = $region60
        $region59: #{tpu_custom_call.1} parent=55 // pred_region
          %s1599 = ssub.s32 64, 64
          %1600 = vsyncadd %s1591, %s1599
          %s1601 = smul.addr %s23, 64
          %s1602 = scalar_lea.hbm %s9, %s1601
          %s1604 = sshll.u32 %s1594, 4
          %s1605 = int_to_ptr.vmem [resolvable:$true] %s1604
          %1607 = dma.vmem_to_hbm [thread:$0]  %s1605, 64, %s1602, %s1591
        $region60: #{tpu_custom_call.1} parent=55 // pred_fallthru
          _
      $region56: #{tpu_custom_call.1} parent=5 // pred_fallthru
        _
      %p1608 = scmp.le.s32.totalorder 2, %s18
      // Predicated region
      $region61: #{tpu_custom_call.1} parent=5 // pred_check
        %p1609 = pneg %p1608
      $region62: #{tpu_custom_call.1} parent=5 // pred_check_branch
        %1611 = sbr.rel (%p1609) target = $region64
      $region63: #{tpu_custom_call.1} parent=5 // pred_region
        %s1612 = ssub.s32 %s18, 2
        // Predicated region
        $region65: #{tpu_custom_call.1} parent=63 // pred_check
          %p1613 = pneg %p241
        $region66: #{tpu_custom_call.1} parent=63 // pred_check_branch
          %1615 = sbr.rel (%p1613) target = $region68
        $region67: #{tpu_custom_call.1} parent=63 // pred_region
          %s1616 = sand.u32 %s226, 1
          %s1617 = scalar_lea.sflag [#allocation3], %s1616
          %s1618 = sand.u32 %s226, 1
          %s1619 = smul.addr %s1618, 4
          %s1620 = scalar_lea.vmem [#allocation2], %s1619
          %1621 = dma.done %s1617, 64
        $region68: #{tpu_custom_call.1} parent=63 // pred_fallthru
          _
      $region64: #{tpu_custom_call.1} parent=5 // pred_fallthru
        _
    $region6: #{tpu_custom_call.1} parent=1 // loop_footer
      %s22 = sadd.s32 1, %s18
    $region7: #{tpu_custom_call.1} parent=1 // loop_footer_branch
      %17 = sbr.rel target = $region3
    $region8: #{tpu_custom_call.1} parent=1 // loop_exit
      _
    %1622 = vsyncpa [#allocation3], 1
    %s1623 = scalar_lea.sflag [#allocation3], 1
    %1624 = vsyncpa %s1623, 1

</llo_original>
